<compile_context>
chip_gen: v5e
topology: v5e:2x2
jax: 0.10.0
libtpu: 0.0.40
codegen_flags: <defaults>
</compile_context>

<pallas_src>
import functools

import jax
import jax.numpy as jnp
from jax.experimental import pallas as pl
from jax.experimental.pallas import tpu as pltpu


def _bn_train_kernel(x_ref, g_ref, b_ref, o_ref, *, eps, inv_n):
    # x_ref: (N, TC, HW)   g_ref/b_ref: (1, TC, 1)   o_ref: (N, TC, HW)
    x = x_ref[...].astype(jnp.float32)
    mean = jnp.sum(x, axis=(0, 2), keepdims=True) * inv_n          # (1, TC, 1)

    # two-pass (centered) variance, re-reading x from VMEM so that x and the
    # centered copy are not both live across the whole tile.
    xc = x_ref[...].astype(jnp.float32) - mean
    var = jnp.sum(xc * xc, axis=(0, 2), keepdims=True) * inv_n     # biased var

    inv = jax.lax.rsqrt(var + eps)
    scale = inv * g_ref[...].astype(jnp.float32)                   # (1, TC, 1)
    shift = b_ref[...].astype(jnp.float32) - mean * scale          # (1, TC, 1)

    y = x_ref[...].astype(jnp.float32) * scale + shift
    o_ref[...] = y.astype(o_ref.dtype)


def batchnorm2d_train(x, gamma, beta, *, eps=1e-3, tc=144):
    """Training-mode BatchNorm2d forward. x: (N, C, H, W).

    tc must divide C and be a multiple of 8 (f32 sublane rule); for C=432 the
    valid choices are 8,16,24,48,72,144,216,432.  tc=144 -> 3 grid steps
    (use tc=72 if specifically targeting v7x's two TensorCores).
    """
    N, C, H, W = x.shape
    assert C % tc == 0 and tc % 8 == 0, "tc must divide C and be a multiple of 8"
    HW = H * W
    inv_n = 1.0 / float(N * HW)

    xr = x.reshape(N, C, HW)          # free reshape, no transpose
    g = gamma.reshape(1, C, 1)
    b = beta.reshape(1, C, 1)

    out = pl.pallas_call(
        functools.partial(_bn_train_kernel, eps=eps, inv_n=inv_n),
        out_shape=jax.ShapeDtypeStruct((N, C, HW), x.dtype),
        grid=(C // tc,),
        in_specs=[
            pl.BlockSpec((N, tc, HW), lambda i: (0, i, 0)),
            pl.BlockSpec((1, tc, 1), lambda i: (0, i, 0)),
            pl.BlockSpec((1, tc, 1), lambda i: (0, i, 0)),
        ],
        out_specs=pl.BlockSpec((N, tc, HW), lambda i: (0, i, 0)),
        compiler_params=pltpu.CompilerParams(
            dimension_semantics=("parallel",),
        ),
    )(xr, g, b)

    return out.reshape(N, C, H, W)


def batchnorm2d_ref(x, gamma, beta, eps=1e-3):
    mean = jnp.mean(x, axis=(0, 2, 3), keepdims=True)
    var = jnp.mean((x - mean) ** 2, axis=(0, 2, 3), keepdims=True)
    return (x - mean) / jnp.sqrt(var + eps) * gamma.reshape(1, -1, 1, 1) + beta.reshape(1, -1, 1, 1)


if __name__ == "__main__":
    key = jax.random.PRNGKey(0)
    kx, kg, kb = jax.random.split(key, 3)

    # shapes fixed by the module: BatchNorm2d(432), input (1, 432, 28, 28).
    N, C, H, W = 1, 432, 28, 28
    x = jax.random.normal(kx, (N, C, H, W), dtype=jnp.float32)
    # randomized affine params to exercise the scale/shift path (fresh PyTorch
    # init would be gamma=1, beta=0).
    gamma = 1.0 + 0.1 * jax.random.normal(kg, (C,), dtype=jnp.float32)
    beta = 0.1 * jax.random.normal(kb, (C,), dtype=jnp.float32)

    y = batchnorm2d_train(x, gamma, beta, eps=1e-3)
    y = jax.block_until_ready(y)

    y_ref = batchnorm2d_ref(x, gamma, beta, eps=1e-3)
    assert y.shape == (N, C, H, W)
    assert jnp.allclose(y, y_ref, atol=1e-4, rtol=1e-4), float(jnp.max(jnp.abs(y - y_ref)))

    print("KERNEL_OK")
</pallas_src>

<mosaic_0001>
module attributes {stable_mosaic.version = 11 : i64} {
  func.func @_bn_train_kernel(%arg0: i32, %arg1: memref<1x144x784xf32, #tpu.memory_space<vmem>>, %arg2: memref<1x144x1xf32, #tpu.memory_space<vmem>>, %arg3: memref<1x144x1xf32, #tpu.memory_space<vmem>>, %arg4: memref<1x144x784xf32, #tpu.memory_space<vmem>>) attributes {dimension_semantics = [#tpu.dimension_semantics<parallel>], iteration_bounds = array<i64: 3>, scalar_prefetch = 0 : i64, scratch_operands = 0 : i64, tpu.core_type = #tpu.core_type<tc>, window_params = [{transform_indices = @transform_0, window_bounds = array<i64: 1, 144, 784>}, {transform_indices = @transform_1, window_bounds = array<i64: 1, 144, 1>}, {transform_indices = @transform_2, window_bounds = array<i64: 1, 144, 1>}, {transform_indices = @transform_3, window_bounds = array<i64: 1, 144, 784>}]} {
    %c0 = arith.constant 0 : index
    %c0_0 = arith.constant 0 : index
    %c0_1 = arith.constant 0 : index
    %0 = vector.load %arg1[%c0, %c0_0, %c0_1] : memref<1x144x784xf32, #tpu.memory_space<vmem>>, vector<1x144x784xf32>
    %cst = arith.constant dense<0.000000e+00> : vector<144xf32>
    %1 = vector.multi_reduction <add>, %0, %cst [0, 2] : vector<1x144x784xf32> to vector<144xf32>
    %2 = vector.shape_cast %1 : vector<144xf32> to vector<1x144x1xf32>
    %cst_2 = arith.constant 0.00127551018 : f32
    %3 = vector.broadcast %cst_2 : f32 to vector<1x144x1xf32>
    %4 = arith.mulf %2, %3 : vector<1x144x1xf32>
    %c0_3 = arith.constant 0 : index
    %c0_4 = arith.constant 0 : index
    %c0_5 = arith.constant 0 : index
    %5 = vector.load %arg1[%c0_3, %c0_4, %c0_5] : memref<1x144x784xf32, #tpu.memory_space<vmem>>, vector<1x144x784xf32>
    %6 = vector.broadcast %4 : vector<1x144x1xf32> to vector<1x144x784xf32>
    %7 = arith.subf %5, %6 : vector<1x144x784xf32>
    %8 = arith.mulf %7, %7 : vector<1x144x784xf32>
    %cst_6 = arith.constant dense<0.000000e+00> : vector<144xf32>
    %9 = vector.multi_reduction <add>, %8, %cst_6 [0, 2] : vector<1x144x784xf32> to vector<144xf32>
    %10 = vector.shape_cast %9 : vector<144xf32> to vector<1x144x1xf32>
    %cst_7 = arith.constant 0.00127551018 : f32
    %11 = vector.broadcast %cst_7 : f32 to vector<1x144x1xf32>
    %12 = arith.mulf %10, %11 : vector<1x144x1xf32>
    %cst_8 = arith.constant 1.000000e-03 : f32
    %13 = vector.broadcast %cst_8 : f32 to vector<1x144x1xf32>
    %14 = arith.addf %12, %13 : vector<1x144x1xf32>
    %15 = math.rsqrt %14 : vector<1x144x1xf32>
    %c0_9 = arith.constant 0 : index
    %c0_10 = arith.constant 0 : index
    %c0_11 = arith.constant 0 : index
    %16 = vector.load %arg2[%c0_9, %c0_10, %c0_11] : memref<1x144x1xf32, #tpu.memory_space<vmem>>, vector<1x144x1xf32>
    %17 = arith.mulf %15, %16 : vector<1x144x1xf32>
    %c0_12 = arith.constant 0 : index
    %c0_13 = arith.constant 0 : index
    %c0_14 = arith.constant 0 : index
    %18 = vector.load %arg3[%c0_12, %c0_13, %c0_14] : memref<1x144x1xf32, #tpu.memory_space<vmem>>, vector<1x144x1xf32>
    %19 = arith.mulf %4, %17 : vector<1x144x1xf32>
    %20 = arith.subf %18, %19 : vector<1x144x1xf32>
    %c0_15 = arith.constant 0 : index
    %c0_16 = arith.constant 0 : index
    %c0_17 = arith.constant 0 : index
    %21 = vector.load %arg1[%c0_15, %c0_16, %c0_17] : memref<1x144x784xf32, #tpu.memory_space<vmem>>, vector<1x144x784xf32>
    %22 = vector.broadcast %17 : vector<1x144x1xf32> to vector<1x144x784xf32>
    %23 = arith.mulf %21, %22 : vector<1x144x784xf32>
    %24 = vector.broadcast %20 : vector<1x144x1xf32> to vector<1x144x784xf32>
    %25 = arith.addf %23, %24 : vector<1x144x784xf32>
    %c0_18 = arith.constant 0 : index
    %c0_19 = arith.constant 0 : index
    %c0_20 = arith.constant 0 : index
    %26 = vector.load %arg4[%c0_18, %c0_19, %c0_20] : memref<1x144x784xf32, #tpu.memory_space<vmem>>, vector<1x144x784xf32>
    tpu.vector_store %arg4[%c0_18, %c0_19, %c0_20], %25 {strides = array<i32>} : memref<1x144x784xf32, #tpu.memory_space<vmem>>, vector<1x144x784xf32>,
    return
  }
  func.func @transform_0(%arg0: i32) -> (i32, i32, i32) {
    %c0_i32 = arith.constant 0 : i32
    %c0_i32_0 = arith.constant 0 : i32
    %c0_i32_1 = arith.constant 0 : i32
    return %c0_i32, %arg0, %c0_i32_0 : i32, i32, i32
  }
  func.func @transform_1(%arg0: i32) -> (i32, i32, i32) {
    %c0_i32 = arith.constant 0 : i32
    %c0_i32_0 = arith.constant 0 : i32
    %c0_i32_1 = arith.constant 0 : i32
    return %c0_i32, %arg0, %c0_i32_0 : i32, i32, i32
  }
  func.func @transform_2(%arg0: i32) -> (i32, i32, i32) {
    %c0_i32 = arith.constant 0 : i32
    %c0_i32_0 = arith.constant 0 : i32
    %c0_i32_1 = arith.constant 0 : i32
    return %c0_i32, %arg0, %c0_i32_0 : i32, i32, i32
  }
  func.func @transform_3(%arg0: i32) -> (i32, i32, i32) {
    %c0_i32 = arith.constant 0 : i32
    %c0_i32_0 = arith.constant 0 : i32
    %c0_i32_1 = arith.constant 0 : i32
    return %c0_i32, %arg0, %c0_i32_0 : i32, i32, i32
  }
}

</mosaic_0001>

<llo_original>
// kernel: tpu_custom_call.1
$region0: #{tpu_custom_call.1}
  #allocation0 [shape = 'u32[]', space=smem, size = 0x4, offset = 0x4, fixed_abs, tag = 'smem constant byte address 0x4 - core index']
  #allocation1 [shape = 'u32[72,128]{1,0:T(1,128)}', space=vmem, size = 0x9000, scoped, tag = 'internal scratch']
  %s0 = inlined_call_operand.hbm [shape: f32[1,432,784], index: 0, kind: input, shape index: {}]
  %s1 = inlined_call_operand.vmem [shape: f32[1,432,1], index: 1, kind: input, shape index: {}]
  %s2 = inlined_call_operand.vmem [shape: f32[1,432,1], index: 2, kind: input, shape index: {}]
  %s3 = inlined_call_operand.hbm [shape: f32[1,432,784], index: 3, kind: output, shape index: {}]
  %s4 = sld [smem:[#allocation0]]
  $region49: #{tpu_custom_call.1} parent=0
    _
  %s6 = ssub.s32 1, %s4
  %s7 = scalar_select 0, %s6, %s4
  $region1: #{tpu_custom_call.1} parent=0
    #allocation2 [shape = 'u8[1032192]{0}', space=vmem, size = 0xfc000, scoped, tag = 'input window, operand 0']
    #allocation3 [shape = 's32[2]{0}', space=sflag, size = 0x8, scoped, tag = 'scoped memory for tpu_custom_call.1']
    #allocation4 [shape = 's32[2]{0}', space=sflag, size = 0x8, scoped, tag = 'scoped memory for tpu_custom_call.1']
    #allocation5 [shape = 'u8[1032192]{0}', space=vmem, size = 0xfc000, scoped, tag = 'output window, operand 0']
    %8 = vsyncpa [#allocation3], 0
    %s9 = scalar_lea.sflag [#allocation3], 1
    %10 = vsyncpa %s9, 0
    %11 = vsyncpa [#allocation4], 0
    %s12 = scalar_lea.sflag [#allocation4], 1
    %13 = vsyncpa %s12, 0
    loop: start=0, step=1, limit=5
    $region2: #{tpu_custom_call.1} parent=1 // loop_pre_header
      _
    $region3: #{tpu_custom_call.1} parent=1 // loop_header
      %s15 = sphi 0, %s19
      %p16 = scmp.ge.s32.totalorder %s15, 5
      %s25 = sphi 0, %s27
      %s28 = sphi 0, %s25
      %s29 = sphi 0, %s28
      %s45 = sphi 0, %s29
      %s51 = sphi 0, %s53
      %s54 = sphi 0, %s51
      %s55 = sphi 0, %s54
      %s71 = sphi 0, %s55
      %s77 = sphi 0, %s79
      %s80 = sphi 0, %s77
      %s81 = sphi 0, %s80
      %s97 = sphi 0, %s81
      %s103 = sphi 0, %s105
      %s106 = sphi 0, %s103
      %s107 = sphi 0, %s106
      %s123 = sphi 0, %s107
    $region4: #{tpu_custom_call.1} parent=1 // loop_header_branch
      %18 = sbr.rel (%p16) target = $region8
    $region5: #{tpu_custom_call.1} parent=1 // loop_body
      %s20 = ssub.s32 %s15, 1
      %s21 = ssub.s32 %s15, 2
      %s22 = sadd.s32 %s15, 1
      %s23 = ssub.s32 %s15, %s22
      %p24 = scmp.eq.s32.totalorder %s23, 0
      %s26 = sadd.s32 %s25, 1
      %s27 = scalar_select %p24, %s25, %s26
      %p30 = pneg %p24
      %p31 = scmp.eq.s32.totalorder %s15, 2
      %p32 = por %p30, %p31
      %p33 = scmp.ne.s32.totalorder %s25, %s28
      %p34 = scmp.eq.s32.totalorder %s15, 0
      %p35 = por %p33, %p34
      %p36 = scmp.ne.s32.totalorder %s25, %s28
      %p37 = scmp.eq.s32.totalorder %s20, 2
      %p38 = por %p36, %p37
      %p39 = scmp.ne.s32.totalorder %s28, %s29
      %p40 = scmp.eq.s32.totalorder %s20, 0
      %p41 = por %p39, %p40
      %p42 = scmp.ne.s32.totalorder %s28, %s29
      %p43 = scmp.eq.s32.totalorder %s21, 2
      %p44 = por %p42, %p43
      %p46 = scmp.ne.s32.totalorder %s29, %s45
      %p47 = scmp.eq.s32.totalorder %s21, 0
      %p48 = por %p46, %p47
      %s49 = ssub.s32 %s15, %s22
      %p50 = scmp.eq.s32.totalorder %s49, 0
      %s52 = sadd.s32 %s51, 1
      %s53 = scalar_select %p50, %s51, %s52
      %p56 = pneg %p50
      %p57 = scmp.eq.s32.totalorder %s15, 2
      %p58 = por %p56, %p57
      %p59 = scmp.ne.s32.totalorder %s51, %s54
      %p60 = scmp.eq.s32.totalorder %s15, 0
      %p61 = por %p59, %p60
      %p62 = scmp.ne.s32.totalorder %s51, %s54
      %p63 = scmp.eq.s32.totalorder %s20, 2
      %p64 = por %p62, %p63
      %p65 = scmp.ne.s32.totalorder %s54, %s55
      %p66 = scmp.eq.s32.totalorder %s20, 0
      %p67 = por %p65, %p66
      %p68 = scmp.ne.s32.totalorder %s54, %s55
      %p69 = scmp.eq.s32.totalorder %s21, 2
      %p70 = por %p68, %p69
      %p72 = scmp.ne.s32.totalorder %s55, %s71
      %p73 = scmp.eq.s32.totalorder %s21, 0
      %p74 = por %p72, %p73
      %s75 = ssub.s32 %s15, %s22
      %p76 = scmp.eq.s32.totalorder %s75, 0
      %s78 = sadd.s32 %s77, 1
      %s79 = scalar_select %p76, %s77, %s78
      %p82 = pneg %p76
      %p83 = scmp.eq.s32.totalorder %s15, 2
      %p84 = por %p82, %p83
      %p85 = scmp.ne.s32.totalorder %s77, %s80
      %p86 = scmp.eq.s32.totalorder %s15, 0
      %p87 = por %p85, %p86
      %p88 = scmp.ne.s32.totalorder %s77, %s80
      %p89 = scmp.eq.s32.totalorder %s20, 2
      %p90 = por %p88, %p89
      %p91 = scmp.ne.s32.totalorder %s80, %s81
      %p92 = scmp.eq.s32.totalorder %s20, 0
      %p93 = por %p91, %p92
      %p94 = scmp.ne.s32.totalorder %s80, %s81
      %p95 = scmp.eq.s32.totalorder %s21, 2
      %p96 = por %p94, %p95
      %p98 = scmp.ne.s32.totalorder %s81, %s97
      %p99 = scmp.eq.s32.totalorder %s21, 0
      %p100 = por %p98, %p99
      %s101 = ssub.s32 %s15, %s22
      %p102 = scmp.eq.s32.totalorder %s101, 0
      %s104 = sadd.s32 %s103, 1
      %s105 = scalar_select %p102, %s103, %s104
      %p108 = pneg %p102
      %p109 = scmp.eq.s32.totalorder %s15, 2
      %p110 = por %p108, %p109
      %p111 = scmp.ne.s32.totalorder %s103, %s106
      %p112 = scmp.eq.s32.totalorder %s15, 0
      %p113 = por %p111, %p112
      %p114 = scmp.ne.s32.totalorder %s103, %s106
      %p115 = scmp.eq.s32.totalorder %s20, 2
      %p116 = por %p114, %p115
      %p117 = scmp.ne.s32.totalorder %s106, %s107
      %p118 = scmp.eq.s32.totalorder %s20, 0
      %p119 = por %p117, %p118
      %p120 = scmp.ne.s32.totalorder %s106, %s107
      %p121 = scmp.eq.s32.totalorder %s21, 2
      %p122 = por %p120, %p121
      %p124 = scmp.ne.s32.totalorder %s107, %s123
      %p125 = scmp.eq.s32.totalorder %s21, 0
      %p126 = por %p124, %p125
      %p127 = scmp.le.s32.totalorder 1, %s15
      %p128 = scmp.lt.s32.totalorder %s15, 4
      %p129 = pnand %p127, %p128
      %p130 = pneg %p129
      // Predicated region
      $region9: #{tpu_custom_call.1} parent=5 // pred_check
        _
      $region10: #{tpu_custom_call.1} parent=5 // pred_check_branch
        %132 = sbr.rel (%p129) target = $region12
      $region11: #{tpu_custom_call.1} parent=5 // pred_region
        %s133 = ssub.s32 %s15, 1
      $region12: #{tpu_custom_call.1} parent=5 // pred_fallthru
        _
      %p134 = scmp.lt.s32.totalorder %s15, 3
      // Predicated region
      $region13: #{tpu_custom_call.1} parent=5 // pred_check
        %p135 = pneg %p134
      $region14: #{tpu_custom_call.1} parent=5 // pred_check_branch
        %137 = sbr.rel (%p135) target = $region16
      $region15: #{tpu_custom_call.1} parent=5 // pred_region
        // Predicated region
        $region17: #{tpu_custom_call.1} parent=15 // pred_check
          %p138 = pneg %p35
        $region18: #{tpu_custom_call.1} parent=15 // pred_check_branch
          %140 = sbr.rel (%p138) target = $region20
        $region19: #{tpu_custom_call.1} parent=15 // pred_region
          %s141 = sand.u32 %s25, 1
          %s142 = scalar_lea.sflag [#allocation3], %s141
          %s143 = sand.u32 %s25, 1
          %s144 = smul.addr %s143, 1008
          %s145 = scalar_lea.vmem [#allocation2], %s144
          %s146 = smul.u32 18, %s15
          %148 = vsyncadd %s142, 0
          %s149 = smul.addr %s146, 7
          %s150 = smul.addr %s149, 8
          %s151 = scalar_lea.hbm %s0, %s150
          %s152 = sshll.u32 %s151, 4
          %s153 = int_to_ptr.hbm [resolvable:$true] %s152
          %s154 = sshll.u32 %s145, 4
          %s155 = int_to_ptr.vmem [resolvable:$true] %s154
          %160 = dma.hbm_to_vmem [thread:$0]  %s153, 16128, %s155, %s142, 896, 896, 56
        $region20: #{tpu_custom_call.1} parent=15 // pred_fallthru
          _
        // Predicated region
        $region21: #{tpu_custom_call.1} parent=15 // pred_check
          %p161 = pneg %p61
        $region22: #{tpu_custom_call.1} parent=15 // pred_check_branch
          %163 = sbr.rel (%p161) target = $region24
        $region23: #{tpu_custom_call.1} parent=15 // pred_region
          %s164 = smul.u32 18, %s15
          %p165 = scmp.lt.s32.totalorder %s164, 53
          %s166 = scalar_select %p165, %s164, 53
          %s167 = smul.addr %s166, 8
          %s168 = scalar_lea.vmem %s1, %s167
          %s169 = smul.u32 18, %s15
        $region24: #{tpu_custom_call.1} parent=15 // pred_fallthru
          _
        // Predicated region
        $region25: #{tpu_custom_call.1} parent=15 // pred_check
          %p170 = pneg %p87
        $region26: #{tpu_custom_call.1} parent=15 // pred_check_branch
          %172 = sbr.rel (%p170) target = $region28
        $region27: #{tpu_custom_call.1} parent=15 // pred_region
          %s173 = smul.u32 18, %s15
          %p174 = scmp.lt.s32.totalorder %s173, 53
          %s175 = scalar_select %p174, %s173, 53
          %s176 = smul.addr %s175, 8
          %s177 = scalar_lea.vmem %s2, %s176
          %s178 = smul.u32 18, %s15
        $region28: #{tpu_custom_call.1} parent=15 // pred_fallthru
          _
      $region16: #{tpu_custom_call.1} parent=5 // pred_fallthru
        _
      %p179 = scmp.le.s32.totalorder 1, %s15
      %p180 = scmp.lt.s32.totalorder %s15, 4
      %p181 = pnand %p179, %p180
      %p182 = pneg %p181
      // Predicated region
      $region29: #{tpu_custom_call.1} parent=5 // pred_check
        _
      $region30: #{tpu_custom_call.1} parent=5 // pred_check_branch
        %184 = sbr.rel (%p181) target = $region32
      $region31: #{tpu_custom_call.1} parent=5 // pred_region
        %s185 = ssub.s32 %s15, 1
        %s186 = sand.u32 %s28, 1
        %s187 = scalar_lea.sflag [#allocation3], %s186
        %s188 = sand.u32 %s28, 1
        %s189 = smul.addr %s188, 1008
        %s190 = scalar_lea.vmem [#allocation2], %s189
        // Predicated region
        $region33: #{tpu_custom_call.1} parent=31 // pred_check
          %p191 = pneg %p41
        $region34: #{tpu_custom_call.1} parent=31 // pred_check_branch
          %193 = sbr.rel (%p191) target = $region36
        $region35: #{tpu_custom_call.1} parent=31 // pred_region
          %195 = dma.done %s187, 16128
        $region36: #{tpu_custom_call.1} parent=31 // pred_fallthru
          _
        %s196 = sand.u32 %s28, 1
        %s197 = scalar_lea.sflag [#allocation3], %s196
        %s198 = sand.u32 %s28, 1
        %s199 = smul.addr %s198, 1008
        %s200 = scalar_lea.vmem [#allocation2], %s199
        %p201 = pneg %p41
        %p202 = pneg %p38
        %s203 = smul.u32 18, %s20
        %p204 = scmp.lt.s32.totalorder %s203, 53
        %s205 = scalar_select %p204, %s203, 53
        %s206 = smul.addr %s205, 8
        %s207 = scalar_lea.vmem %s1, %s206
        %p208 = pneg %p67
        %p209 = pneg %p64
        %s210 = smul.u32 18, %s20
        %p211 = scmp.lt.s32.totalorder %s210, 53
        %s212 = scalar_select %p211, %s210, 53
        %s213 = smul.addr %s212, 8
        %s214 = scalar_lea.vmem %s2, %s213
        %p215 = pneg %p93
        %p216 = pneg %p90
        %p217 = pneg %p119
        %p218 = pneg %p116
        %s219 = sand.u32 %s106, 1
        %s220 = scalar_lea.sflag [#allocation4], %s219
        %s221 = sand.u32 %s106, 1
        %s222 = smul.addr %s221, 1008
        %s223 = scalar_lea.vmem [#allocation5], %s222
        %s224 = smul.u32 18, %s20
        %s225 = smul.u32 18, %s20
        %p226 = scmp.lt.s32.totalorder %s225, 53
        %s227 = scalar_select %p226, %s225, 53
        %s228 = smul.addr %s227, 8
        %s229 = scalar_lea.vmem %s1, %s228
        %s230 = smul.u32 18, %s20
        %s231 = smul.u32 18, %s20
        %p232 = scmp.lt.s32.totalorder %s231, 53
        %s233 = scalar_select %p232, %s231, 53
        %s234 = smul.addr %s233, 8
        %s235 = scalar_lea.vmem %s2, %s234
        %s236 = smul.u32 18, %s20
        %s237 = smul.u32 18, %s20
        %v238 = vld [vmem:[%s190] sm:$0xff]
        %v239 = vld [vmem:[%s190 + $0x8] sm:$0xff]
        %v240 = vld [vmem:[%s190 + $0x10] sm:$0xff]
        %v241 = vld [vmem:[%s190 + $0x18] sm:$0xff]
        %v242 = vld [vmem:[%s190 + $0x20] sm:$0xff]
        %v243 = vld [vmem:[%s190 + $0x28] sm:$0xff]
        %v244 = vld [vmem:[%s190 + $0x30] sm:$0xff]
        %v245 = vld [vmem:[%s190 + $0x38] sm:$0xff]
        %v246 = vld [vmem:[%s190 + $0x40] sm:$0xff]
        %v247 = vld [vmem:[%s190 + $0x48] sm:$0xff]
        %v248 = vld [vmem:[%s190 + $0x50] sm:$0xff]
        %v249 = vld [vmem:[%s190 + $0x58] sm:$0xff]
        %v250 = vld [vmem:[%s190 + $0x60] sm:$0xff]
        %v251 = vld [vmem:[%s190 + $0x68] sm:$0xff]
        %v252 = vld [vmem:[%s190 + $0x70] sm:$0xff]
        %v253 = vld [vmem:[%s190 + $0x78] sm:$0xff]
        %v254 = vld [vmem:[%s190 + $0x80] sm:$0xff]
        %v255 = vld [vmem:[%s190 + $0x88] sm:$0xff]
        %v256 = vld [vmem:[%s190 + $0x90] sm:$0xff]
        %v257 = vld [vmem:[%s190 + $0x98] sm:$0xff]
        %v258 = vld [vmem:[%s190 + $0xa0] sm:$0xff]
        %v259 = vld [vmem:[%s190 + $0xa8] sm:$0xff]
        %v260 = vld [vmem:[%s190 + $0xb0] sm:$0xff]
        %v261 = vld [vmem:[%s190 + $0xb8] sm:$0xff]
        %v262 = vld [vmem:[%s190 + $0xc0] sm:$0xff]
        %v263 = vld [vmem:[%s190 + $0xc8] sm:$0xff]
        %v264 = vld [vmem:[%s190 + $0xd0] sm:$0xff]
        %v265 = vld [vmem:[%s190 + $0xd8] sm:$0xff]
        %v266 = vld [vmem:[%s190 + $0xe0] sm:$0xff]
        %v267 = vld [vmem:[%s190 + $0xe8] sm:$0xff]
        %v268 = vld [vmem:[%s190 + $0xf0] sm:$0xff]
        %v269 = vld [vmem:[%s190 + $0xf8] sm:$0xff]
        %v270 = vld [vmem:[%s190 + $0x100] sm:$0xff]
        %v271 = vld [vmem:[%s190 + $0x108] sm:$0xff]
        %v272 = vld [vmem:[%s190 + $0x110] sm:$0xff]
        %v273 = vld [vmem:[%s190 + $0x118] sm:$0xff]
        %v274 = vld [vmem:[%s190 + $0x120] sm:$0xff]
        %v275 = vld [vmem:[%s190 + $0x128] sm:$0xff]
        %v276 = vld [vmem:[%s190 + $0x130] sm:$0xff]
        %v277 = vld [vmem:[%s190 + $0x138] sm:$0xff]
        %v278 = vld [vmem:[%s190 + $0x140] sm:$0xff]
        %v279 = vld [vmem:[%s190 + $0x148] sm:$0xff]
        %v280 = vld [vmem:[%s190 + $0x150] sm:$0xff]
        %v281 = vld [vmem:[%s190 + $0x158] sm:$0xff]
        %v282 = vld [vmem:[%s190 + $0x160] sm:$0xff]
        %v283 = vld [vmem:[%s190 + $0x168] sm:$0xff]
        %v284 = vld [vmem:[%s190 + $0x170] sm:$0xff]
        %v285 = vld [vmem:[%s190 + $0x178] sm:$0xff]
        %v286 = vld [vmem:[%s190 + $0x180] sm:$0xff]
        %v287 = vld [vmem:[%s190 + $0x188] sm:$0xff]
        %v288 = vld [vmem:[%s190 + $0x190] sm:$0xff]
        %v289 = vld [vmem:[%s190 + $0x198] sm:$0xff]
        %v290 = vld [vmem:[%s190 + $0x1a0] sm:$0xff]
        %v291 = vld [vmem:[%s190 + $0x1a8] sm:$0xff]
        %v292 = vld [vmem:[%s190 + $0x1b0] sm:$0xff]
        %v293 = vld [vmem:[%s190 + $0x1b8] sm:$0xff]
        %v294 = vld [vmem:[%s190 + $0x1c0] sm:$0xff]
        %v295 = vld [vmem:[%s190 + $0x1c8] sm:$0xff]
        %v296 = vld [vmem:[%s190 + $0x1d0] sm:$0xff]
        %v297 = vld [vmem:[%s190 + $0x1d8] sm:$0xff]
        %v298 = vld [vmem:[%s190 + $0x1e0] sm:$0xff]
        %v299 = vld [vmem:[%s190 + $0x1e8] sm:$0xff]
        %v300 = vld [vmem:[%s190 + $0x1f0] sm:$0xff]
        %v301 = vld [vmem:[%s190 + $0x1f8] sm:$0xff]
        %v302 = vld [vmem:[%s190 + $0x200] sm:$0xff]
        %v303 = vld [vmem:[%s190 + $0x208] sm:$0xff]
        %v304 = vld [vmem:[%s190 + $0x210] sm:$0xff]
        %v305 = vld [vmem:[%s190 + $0x218] sm:$0xff]
        %v306 = vld [vmem:[%s190 + $0x220] sm:$0xff]
        %v307 = vld [vmem:[%s190 + $0x228] sm:$0xff]
        %v308 = vld [vmem:[%s190 + $0x230] sm:$0xff]
        %v309 = vld [vmem:[%s190 + $0x238] sm:$0xff]
        %v310 = vld [vmem:[%s190 + $0x240] sm:$0xff]
        %v311 = vld [vmem:[%s190 + $0x248] sm:$0xff]
        %v312 = vld [vmem:[%s190 + $0x250] sm:$0xff]
        %v313 = vld [vmem:[%s190 + $0x258] sm:$0xff]
        %v314 = vld [vmem:[%s190 + $0x260] sm:$0xff]
        %v315 = vld [vmem:[%s190 + $0x268] sm:$0xff]
        %v316 = vld [vmem:[%s190 + $0x270] sm:$0xff]
        %v317 = vld [vmem:[%s190 + $0x278] sm:$0xff]
        %v318 = vld [vmem:[%s190 + $0x280] sm:$0xff]
        %v319 = vld [vmem:[%s190 + $0x288] sm:$0xff]
        %v320 = vld [vmem:[%s190 + $0x290] sm:$0xff]
        %v321 = vld [vmem:[%s190 + $0x298] sm:$0xff]
        %v322 = vld [vmem:[%s190 + $0x2a0] sm:$0xff]
        %v323 = vld [vmem:[%s190 + $0x2a8] sm:$0xff]
        %v324 = vld [vmem:[%s190 + $0x2b0] sm:$0xff]
        %v325 = vld [vmem:[%s190 + $0x2b8] sm:$0xff]
        %v326 = vld [vmem:[%s190 + $0x2c0] sm:$0xff]
        %v327 = vld [vmem:[%s190 + $0x2c8] sm:$0xff]
        %v328 = vld [vmem:[%s190 + $0x2d0] sm:$0xff]
        %v329 = vld [vmem:[%s190 + $0x2d8] sm:$0xff]
        %v330 = vld [vmem:[%s190 + $0x2e0] sm:$0xff]
        %v331 = vld [vmem:[%s190 + $0x2e8] sm:$0xff]
        %v332 = vld [vmem:[%s190 + $0x2f0] sm:$0xff]
        %v333 = vld [vmem:[%s190 + $0x2f8] sm:$0xff]
        %v334 = vld [vmem:[%s190 + $0x300] sm:$0xff]
        %v335 = vld [vmem:[%s190 + $0x308] sm:$0xff]
        %v336 = vld [vmem:[%s190 + $0x310] sm:$0xff]
        %v337 = vld [vmem:[%s190 + $0x318] sm:$0xff]
        %v338 = vld [vmem:[%s190 + $0x320] sm:$0xff]
        %v339 = vld [vmem:[%s190 + $0x328] sm:$0xff]
        %v340 = vld [vmem:[%s190 + $0x330] sm:$0xff]
        %v341 = vld [vmem:[%s190 + $0x338] sm:$0xff]
        %v342 = vld [vmem:[%s190 + $0x340] sm:$0xff]
        %v343 = vld [vmem:[%s190 + $0x348] sm:$0xff]
        %v344 = vld [vmem:[%s190 + $0x350] sm:$0xff]
        %v345 = vld [vmem:[%s190 + $0x358] sm:$0xff]
        %v346 = vld [vmem:[%s190 + $0x360] sm:$0xff]
        %v347 = vld [vmem:[%s190 + $0x368] sm:$0xff]
        %v348 = vld [vmem:[%s190 + $0x370] sm:$0xff]
        %v349 = vld [vmem:[%s190 + $0x378] sm:$0xff]
        %v350 = vld [vmem:[%s190 + $0x380] sm:$0xff]
        %v351 = vld [vmem:[%s190 + $0x388] sm:$0xff]
        %v352 = vld [vmem:[%s190 + $0x390] sm:$0xff]
        %v353 = vld [vmem:[%s190 + $0x398] sm:$0xff]
        %v354 = vld [vmem:[%s190 + $0x3a0] sm:$0xff]
        %v355 = vld [vmem:[%s190 + $0x3a8] sm:$0xff]
        %v356 = vld [vmem:[%s190 + $0x3b0] sm:$0xff]
        %v357 = vld [vmem:[%s190 + $0x3b8] sm:$0xff]
        %v358 = vld [vmem:[%s190 + $0x3c0] sm:$0xff]
        %v359 = vld [vmem:[%s190 + $0x3c8] sm:$0xff]
        %v360 = vld [vmem:[%s190 + $0x3d0] sm:$0xff]
        %v361 = vld [vmem:[%s190 + $0x3d8] sm:$0xff]
        %v362 = vld [vmem:[%s190 + $0x3e0] sm:$0xff]
        %v363 = vld [vmem:[%s190 + $0x3e8] sm:$0xff]
        %v364 = vadd.f32 %v238, %v239
        %v365 = vadd.f32 %v364, %v240
        %v366 = vadd.f32 %v365, %v241
        %v367 = vadd.f32 %v366, %v242
        %v368 = vadd.f32 %v367, %v243
        %vm369 = vcmask 130048
        %v370 = vsel %vm369, %v244, 0.0
        %v371 = vadd.f32 %v368, %v370
        %372 = vadd.xlane.f32.xlu0 %v371
        %v373 = vpop.xlane.xlu0 %372
        %v374 = vadd.f32 %v245, %v246
        %v375 = vadd.f32 %v374, %v247
        %v376 = vadd.f32 %v375, %v248
        %v377 = vadd.f32 %v376, %v249
        %v378 = vadd.f32 %v377, %v250
        %v379 = vsel %vm369, %v251, 0.0
        %v380 = vadd.f32 %v378, %v379
        %381 = vadd.xlane.f32.xlu0 %v380
        %v382 = vpop.xlane.xlu0 %381
        %v383 = vadd.f32 %v252, %v253
        %v384 = vadd.f32 %v383, %v254
        %v385 = vadd.f32 %v384, %v255
        %v386 = vadd.f32 %v385, %v256
        %v387 = vadd.f32 %v386, %v257
        %v388 = vsel %vm369, %v258, 0.0
        %v389 = vadd.f32 %v387, %v388
        %390 = vadd.xlane.f32.xlu0 %v389
        %v391 = vpop.xlane.xlu0 %390
        %v392 = vadd.f32 %v259, %v260
        %v393 = vadd.f32 %v392, %v261
        %v394 = vadd.f32 %v393, %v262
        %v395 = vadd.f32 %v394, %v263
        %v396 = vadd.f32 %v395, %v264
        %v397 = vsel %vm369, %v265, 0.0
        %v398 = vadd.f32 %v396, %v397
        %399 = vadd.xlane.f32.xlu0 %v398
        %v400 = vpop.xlane.xlu0 %399
        %v401 = vadd.f32 %v266, %v267
        %v402 = vadd.f32 %v401, %v268
        %v403 = vadd.f32 %v402, %v269
        %v404 = vadd.f32 %v403, %v270
        %v405 = vadd.f32 %v404, %v271
        %v406 = vsel %vm369, %v272, 0.0
        %v407 = vadd.f32 %v405, %v406
        %408 = vadd.xlane.f32.xlu0 %v407
        %v409 = vpop.xlane.xlu0 %408
        %v410 = vadd.f32 %v273, %v274
        %v411 = vadd.f32 %v410, %v275
        %v412 = vadd.f32 %v411, %v276
        %v413 = vadd.f32 %v412, %v277
        %v414 = vadd.f32 %v413, %v278
        %v415 = vsel %vm369, %v279, 0.0
        %v416 = vadd.f32 %v414, %v415
        %417 = vadd.xlane.f32.xlu0 %v416
        %v418 = vpop.xlane.xlu0 %417
        %v419 = vadd.f32 %v280, %v281
        %v420 = vadd.f32 %v419, %v282
        %v421 = vadd.f32 %v420, %v283
        %v422 = vadd.f32 %v421, %v284
        %v423 = vadd.f32 %v422, %v285
        %v424 = vsel %vm369, %v286, 0.0
        %v425 = vadd.f32 %v423, %v424
        %426 = vadd.xlane.f32.xlu0 %v425
        %v427 = vpop.xlane.xlu0 %426
        %v428 = vadd.f32 %v287, %v288
        %v429 = vadd.f32 %v428, %v289
        %v430 = vadd.f32 %v429, %v290
        %v431 = vadd.f32 %v430, %v291
        %v432 = vadd.f32 %v431, %v292
        %v433 = vsel %vm369, %v293, 0.0
        %v434 = vadd.f32 %v432, %v433
        %435 = vadd.xlane.f32.xlu0 %v434
        %v436 = vpop.xlane.xlu0 %435
        %v437 = vadd.f32 %v294, %v295
        %v438 = vadd.f32 %v437, %v296
        %v439 = vadd.f32 %v438, %v297
        %v440 = vadd.f32 %v439, %v298
        %v441 = vadd.f32 %v440, %v299
        %v442 = vsel %vm369, %v300, 0.0
        %v443 = vadd.f32 %v441, %v442
        %444 = vadd.xlane.f32.xlu0 %v443
        %v445 = vpop.xlane.xlu0 %444
        %v446 = vadd.f32 %v301, %v302
        %v447 = vadd.f32 %v446, %v303
        %v448 = vadd.f32 %v447, %v304
        %v449 = vadd.f32 %v448, %v305
        %v450 = vadd.f32 %v449, %v306
        %v451 = vsel %vm369, %v307, 0.0
        %v452 = vadd.f32 %v450, %v451
        %453 = vadd.xlane.f32.xlu0 %v452
        %v454 = vpop.xlane.xlu0 %453
        %v455 = vadd.f32 %v308, %v309
        %v456 = vadd.f32 %v455, %v310
        %v457 = vadd.f32 %v456, %v311
        %v458 = vadd.f32 %v457, %v312
        %v459 = vadd.f32 %v458, %v313
        %v460 = vsel %vm369, %v314, 0.0
        %v461 = vadd.f32 %v459, %v460
        %462 = vadd.xlane.f32.xlu0 %v461
        %v463 = vpop.xlane.xlu0 %462
        %v464 = vadd.f32 %v315, %v316
        %v465 = vadd.f32 %v464, %v317
        %v466 = vadd.f32 %v465, %v318
        %v467 = vadd.f32 %v466, %v319
        %v468 = vadd.f32 %v467, %v320
        %v469 = vsel %vm369, %v321, 0.0
        %v470 = vadd.f32 %v468, %v469
        %471 = vadd.xlane.f32.xlu0 %v470
        %v472 = vpop.xlane.xlu0 %471
        %v473 = vadd.f32 %v322, %v323
        %v474 = vadd.f32 %v473, %v324
        %v475 = vadd.f32 %v474, %v325
        %v476 = vadd.f32 %v475, %v326
        %v477 = vadd.f32 %v476, %v327
        %v478 = vsel %vm369, %v328, 0.0
        %v479 = vadd.f32 %v477, %v478
        %480 = vadd.xlane.f32.xlu0 %v479
        %v481 = vpop.xlane.xlu0 %480
        %v482 = vadd.f32 %v329, %v330
        %v483 = vadd.f32 %v482, %v331
        %v484 = vadd.f32 %v483, %v332
        %v485 = vadd.f32 %v484, %v333
        %v486 = vadd.f32 %v485, %v334
        %v487 = vsel %vm369, %v335, 0.0
        %v488 = vadd.f32 %v486, %v487
        %489 = vadd.xlane.f32.xlu0 %v488
        %v490 = vpop.xlane.xlu0 %489
        %v491 = vadd.f32 %v336, %v337
        %v492 = vadd.f32 %v491, %v338
        %v493 = vadd.f32 %v492, %v339
        %v494 = vadd.f32 %v493, %v340
        %v495 = vadd.f32 %v494, %v341
        %v496 = vsel %vm369, %v342, 0.0
        %v497 = vadd.f32 %v495, %v496
        %498 = vadd.xlane.f32.xlu0 %v497
        %v499 = vpop.xlane.xlu0 %498
        %v500 = vadd.f32 %v343, %v344
        %v501 = vadd.f32 %v500, %v345
        %v502 = vadd.f32 %v501, %v346
        %v503 = vadd.f32 %v502, %v347
        %v504 = vadd.f32 %v503, %v348
        %v505 = vsel %vm369, %v349, 0.0
        %v506 = vadd.f32 %v504, %v505
        %507 = vadd.xlane.f32.xlu0 %v506
        %v508 = vpop.xlane.xlu0 %507
        %v509 = vadd.f32 %v350, %v351
        %v510 = vadd.f32 %v509, %v352
        %v511 = vadd.f32 %v510, %v353
        %v512 = vadd.f32 %v511, %v354
        %v513 = vadd.f32 %v512, %v355
        %v514 = vsel %vm369, %v356, 0.0
        %v515 = vadd.f32 %v513, %v514
        %516 = vadd.xlane.f32.xlu0 %v515
        %v517 = vpop.xlane.xlu0 %516
        %v518 = vadd.f32 %v357, %v358
        %v519 = vadd.f32 %v518, %v359
        %v520 = vadd.f32 %v519, %v360
        %v521 = vadd.f32 %v520, %v361
        %v522 = vadd.f32 %v521, %v362
        %v523 = vsel %vm369, %v363, 0.0
        %v524 = vadd.f32 %v522, %v523
        %525 = vadd.xlane.f32.xlu0 %v524
        %v526 = vpop.xlane.xlu0 %525
        %v527 = vmul.f32 %v373, 0.0012755102
        %v528 = vmul.f32 %v382, 0.0012755102
        %v529 = vmul.f32 %v391, 0.0012755102
        %v530 = vmul.f32 %v400, 0.0012755102
        %v531 = vmul.f32 %v409, 0.0012755102
        %v532 = vmul.f32 %v418, 0.0012755102
        %v533 = vmul.f32 %v427, 0.0012755102
        %v534 = vmul.f32 %v436, 0.0012755102
        %v535 = vmul.f32 %v445, 0.0012755102
        %v536 = vmul.f32 %v454, 0.0012755102
        %v537 = vmul.f32 %v463, 0.0012755102
        %v538 = vmul.f32 %v472, 0.0012755102
        %v539 = vmul.f32 %v481, 0.0012755102
        %v540 = vmul.f32 %v490, 0.0012755102
        %v541 = vmul.f32 %v499, 0.0012755102
        %v542 = vmul.f32 %v508, 0.0012755102
        %v543 = vmul.f32 %v517, 0.0012755102
        %v544 = vmul.f32 %v526, 0.0012755102
        %v545 = vsub.f32 %v238, %v527
        %v546 = vsub.f32 %v239, %v527
        %v547 = vsub.f32 %v240, %v527
        %v548 = vsub.f32 %v241, %v527
        %v549 = vsub.f32 %v242, %v527
        %v550 = vsub.f32 %v243, %v527
        %v551 = vsub.f32 %v244, %v527
        %v552 = vsub.f32 %v245, %v528
        %v553 = vsub.f32 %v246, %v528
        %v554 = vsub.f32 %v247, %v528
        %v555 = vsub.f32 %v248, %v528
        %v556 = vsub.f32 %v249, %v528
        %v557 = vsub.f32 %v250, %v528
        %v558 = vsub.f32 %v251, %v528
        %v559 = vsub.f32 %v252, %v529
        %v560 = vsub.f32 %v253, %v529
        %v561 = vsub.f32 %v254, %v529
        %v562 = vsub.f32 %v255, %v529
        %v563 = vsub.f32 %v256, %v529
        %v564 = vsub.f32 %v257, %v529
        %v565 = vsub.f32 %v258, %v529
        %v566 = vsub.f32 %v259, %v530
        %v567 = vsub.f32 %v260, %v530
        %v568 = vsub.f32 %v261, %v530
        %v569 = vsub.f32 %v262, %v530
        %v570 = vsub.f32 %v263, %v530
        %v571 = vsub.f32 %v264, %v530
        %v572 = vsub.f32 %v265, %v530
        %v573 = vsub.f32 %v266, %v531
        %v574 = vsub.f32 %v267, %v531
        %v575 = vsub.f32 %v268, %v531
        %v576 = vsub.f32 %v269, %v531
        %v577 = vsub.f32 %v270, %v531
        %v578 = vsub.f32 %v271, %v531
        %v579 = vsub.f32 %v272, %v531
        %v580 = vsub.f32 %v273, %v532
        %v581 = vsub.f32 %v274, %v532
        %v582 = vsub.f32 %v275, %v532
        %v583 = vsub.f32 %v276, %v532
        %v584 = vsub.f32 %v277, %v532
        %v585 = vsub.f32 %v278, %v532
        %v586 = vsub.f32 %v279, %v532
        %v587 = vsub.f32 %v280, %v533
        %v588 = vsub.f32 %v281, %v533
        %v589 = vsub.f32 %v282, %v533
        %v590 = vsub.f32 %v283, %v533
        %v591 = vsub.f32 %v284, %v533
        %v592 = vsub.f32 %v285, %v533
        %v593 = vsub.f32 %v286, %v533
        %v594 = vsub.f32 %v287, %v534
        %v595 = vsub.f32 %v288, %v534
        %v596 = vsub.f32 %v289, %v534
        %v597 = vsub.f32 %v290, %v534
        %v598 = vsub.f32 %v291, %v534
        %v599 = vsub.f32 %v292, %v534
        %v600 = vsub.f32 %v293, %v534
        %v601 = vsub.f32 %v294, %v535
        %v602 = vsub.f32 %v295, %v535
        %v603 = vsub.f32 %v296, %v535
        %v604 = vsub.f32 %v297, %v535
        %v605 = vsub.f32 %v298, %v535
        %v606 = vsub.f32 %v299, %v535
        %v607 = vsub.f32 %v300, %v535
        %v608 = vsub.f32 %v301, %v536
        %v609 = vsub.f32 %v302, %v536
        %v610 = vsub.f32 %v303, %v536
        %v611 = vsub.f32 %v304, %v536
        %v612 = vsub.f32 %v305, %v536
        %v613 = vsub.f32 %v306, %v536
        %v614 = vsub.f32 %v307, %v536
        %v615 = vsub.f32 %v308, %v537
        %v616 = vsub.f32 %v309, %v537
        %v617 = vsub.f32 %v310, %v537
        %v618 = vsub.f32 %v311, %v537
        %v619 = vsub.f32 %v312, %v537
        %v620 = vsub.f32 %v313, %v537
        %v621 = vsub.f32 %v314, %v537
        %v622 = vsub.f32 %v315, %v538
        %v623 = vsub.f32 %v316, %v538
        %v624 = vsub.f32 %v317, %v538
        %v625 = vsub.f32 %v318, %v538
        %v626 = vsub.f32 %v319, %v538
        %v627 = vsub.f32 %v320, %v538
        %v628 = vsub.f32 %v321, %v538
        %v629 = vsub.f32 %v322, %v539
        %v630 = vsub.f32 %v323, %v539
        %v631 = vsub.f32 %v324, %v539
        %v632 = vsub.f32 %v325, %v539
        %v633 = vsub.f32 %v326, %v539
        %v634 = vsub.f32 %v327, %v539
        %v635 = vsub.f32 %v328, %v539
        %v636 = vsub.f32 %v329, %v540
        %v637 = vsub.f32 %v330, %v540
        %v638 = vsub.f32 %v331, %v540
        %v639 = vsub.f32 %v332, %v540
        %v640 = vsub.f32 %v333, %v540
        %v641 = vsub.f32 %v334, %v540
        %v642 = vsub.f32 %v335, %v540
        %v643 = vsub.f32 %v336, %v541
        %v644 = vsub.f32 %v337, %v541
        %v645 = vsub.f32 %v338, %v541
        %v646 = vsub.f32 %v339, %v541
        %v647 = vsub.f32 %v340, %v541
        %v648 = vsub.f32 %v341, %v541
        %v649 = vsub.f32 %v342, %v541
        %v650 = vsub.f32 %v343, %v542
        %v651 = vsub.f32 %v344, %v542
        %v652 = vsub.f32 %v345, %v542
        %v653 = vsub.f32 %v346, %v542
        %v654 = vsub.f32 %v347, %v542
        %v655 = vsub.f32 %v348, %v542
        %v656 = vsub.f32 %v349, %v542
        %v657 = vsub.f32 %v350, %v543
        %v658 = vsub.f32 %v351, %v543
        %v659 = vsub.f32 %v352, %v543
        %v660 = vsub.f32 %v353, %v543
        %v661 = vsub.f32 %v354, %v543
        %v662 = vsub.f32 %v355, %v543
        %v663 = vsub.f32 %v356, %v543
        %v664 = vsub.f32 %v357, %v544
        %v665 = vsub.f32 %v358, %v544
        %v666 = vsub.f32 %v359, %v544
        %v667 = vsub.f32 %v360, %v544
        %v668 = vsub.f32 %v361, %v544
        %v669 = vsub.f32 %v362, %v544
        %v670 = vsub.f32 %v363, %v544
        %v671 = vmul.f32 %v545, %v545
        %v672 = vmul.f32 %v546, %v546
        %v673 = vmul.f32 %v547, %v547
        %v674 = vmul.f32 %v548, %v548
        %v675 = vmul.f32 %v549, %v549
        %v676 = vmul.f32 %v550, %v550
        %v677 = vmul.f32 %v551, %v551
        %v678 = vmul.f32 %v552, %v552
        %v679 = vmul.f32 %v553, %v553
        %v680 = vmul.f32 %v554, %v554
        %v681 = vmul.f32 %v555, %v555
        %v682 = vmul.f32 %v556, %v556
        %v683 = vmul.f32 %v557, %v557
        %v684 = vmul.f32 %v558, %v558
        %v685 = vmul.f32 %v559, %v559
        %v686 = vmul.f32 %v560, %v560
        %v687 = vmul.f32 %v561, %v561
        %v688 = vmul.f32 %v562, %v562
        %v689 = vmul.f32 %v563, %v563
        %v690 = vmul.f32 %v564, %v564
        %v691 = vmul.f32 %v565, %v565
        %v692 = vmul.f32 %v566, %v566
        %v693 = vmul.f32 %v567, %v567
        %v694 = vmul.f32 %v568, %v568
        %v695 = vmul.f32 %v569, %v569
        %v696 = vmul.f32 %v570, %v570
        %v697 = vmul.f32 %v571, %v571
        %v698 = vmul.f32 %v572, %v572
        %v699 = vmul.f32 %v573, %v573
        %v700 = vmul.f32 %v574, %v574
        %v701 = vmul.f32 %v575, %v575
        %v702 = vmul.f32 %v576, %v576
        %v703 = vmul.f32 %v577, %v577
        %v704 = vmul.f32 %v578, %v578
        %v705 = vmul.f32 %v579, %v579
        %v706 = vmul.f32 %v580, %v580
        %v707 = vmul.f32 %v581, %v581
        %v708 = vmul.f32 %v582, %v582
        %v709 = vmul.f32 %v583, %v583
        %v710 = vmul.f32 %v584, %v584
        %v711 = vmul.f32 %v585, %v585
        %v712 = vmul.f32 %v586, %v586
        %v713 = vmul.f32 %v587, %v587
        %v714 = vmul.f32 %v588, %v588
        %v715 = vmul.f32 %v589, %v589
        %v716 = vmul.f32 %v590, %v590
        %v717 = vmul.f32 %v591, %v591
        %v718 = vmul.f32 %v592, %v592
        %v719 = vmul.f32 %v593, %v593
        %v720 = vmul.f32 %v594, %v594
        %v721 = vmul.f32 %v595, %v595
        %v722 = vmul.f32 %v596, %v596
        %v723 = vmul.f32 %v597, %v597
        %v724 = vmul.f32 %v598, %v598
        %v725 = vmul.f32 %v599, %v599
        %v726 = vmul.f32 %v600, %v600
        %v727 = vmul.f32 %v601, %v601
        %v728 = vmul.f32 %v602, %v602
        %v729 = vmul.f32 %v603, %v603
        %v730 = vmul.f32 %v604, %v604
        %v731 = vmul.f32 %v605, %v605
        %v732 = vmul.f32 %v606, %v606
        %v733 = vmul.f32 %v607, %v607
        %v734 = vmul.f32 %v608, %v608
        %v735 = vmul.f32 %v609, %v609
        %v736 = vmul.f32 %v610, %v610
        %v737 = vmul.f32 %v611, %v611
        %v738 = vmul.f32 %v612, %v612
        %v739 = vmul.f32 %v613, %v613
        %v740 = vmul.f32 %v614, %v614
        %v741 = vmul.f32 %v615, %v615
        %v742 = vmul.f32 %v616, %v616
        %v743 = vmul.f32 %v617, %v617
        %v744 = vmul.f32 %v618, %v618
        %v745 = vmul.f32 %v619, %v619
        %v746 = vmul.f32 %v620, %v620
        %v747 = vmul.f32 %v621, %v621
        %v748 = vmul.f32 %v622, %v622
        %v749 = vmul.f32 %v623, %v623
        %v750 = vmul.f32 %v624, %v624
        %v751 = vmul.f32 %v625, %v625
        %v752 = vmul.f32 %v626, %v626
        %v753 = vmul.f32 %v627, %v627
        %v754 = vmul.f32 %v628, %v628
        %v755 = vmul.f32 %v629, %v629
        %v756 = vmul.f32 %v630, %v630
        %v757 = vmul.f32 %v631, %v631
        %v758 = vmul.f32 %v632, %v632
        %v759 = vmul.f32 %v633, %v633
        %v760 = vmul.f32 %v634, %v634
        %v761 = vmul.f32 %v635, %v635
        %v762 = vmul.f32 %v636, %v636
        %v763 = vmul.f32 %v637, %v637
        %v764 = vmul.f32 %v638, %v638
        %v765 = vmul.f32 %v639, %v639
        %v766 = vmul.f32 %v640, %v640
        %v767 = vmul.f32 %v641, %v641
        %v768 = vmul.f32 %v642, %v642
        %v769 = vmul.f32 %v643, %v643
        %v770 = vmul.f32 %v644, %v644
        %v771 = vmul.f32 %v645, %v645
        %v772 = vmul.f32 %v646, %v646
        %v773 = vmul.f32 %v647, %v647
        %v774 = vmul.f32 %v648, %v648
        %v775 = vmul.f32 %v649, %v649
        %v776 = vmul.f32 %v650, %v650
        %v777 = vmul.f32 %v651, %v651
        %v778 = vmul.f32 %v652, %v652
        %v779 = vmul.f32 %v653, %v653
        %v780 = vmul.f32 %v654, %v654
        %v781 = vmul.f32 %v655, %v655
        %v782 = vmul.f32 %v656, %v656
        %v783 = vmul.f32 %v657, %v657
        %v784 = vmul.f32 %v658, %v658
        %v785 = vmul.f32 %v659, %v659
        %v786 = vmul.f32 %v660, %v660
        %v787 = vmul.f32 %v661, %v661
        %v788 = vmul.f32 %v662, %v662
        %v789 = vmul.f32 %v663, %v663
        %v790 = vmul.f32 %v664, %v664
        %v791 = vmul.f32 %v665, %v665
        %v792 = vmul.f32 %v666, %v666
        %v793 = vmul.f32 %v667, %v667
        %v794 = vmul.f32 %v668, %v668
        %v795 = vmul.f32 %v669, %v669
        %v796 = vmul.f32 %v670, %v670
        %v797 = vadd.f32 %v671, %v672
        %v798 = vadd.f32 %v797, %v673
        %v799 = vadd.f32 %v798, %v674
        %v800 = vadd.f32 %v799, %v675
        %v801 = vadd.f32 %v800, %v676
        %v802 = vsel %vm369, %v677, 0.0
        %v803 = vadd.f32 %v801, %v802
        %804 = vadd.xlane.f32.xlu0 %v803
        %v805 = vpop.xlane.xlu0 %804
        %v806 = vadd.f32 %v678, %v679
        %v807 = vadd.f32 %v806, %v680
        %v808 = vadd.f32 %v807, %v681
        %v809 = vadd.f32 %v808, %v682
        %v810 = vadd.f32 %v809, %v683
        %v811 = vsel %vm369, %v684, 0.0
        %v812 = vadd.f32 %v810, %v811
        %813 = vadd.xlane.f32.xlu0 %v812
        %v814 = vpop.xlane.xlu0 %813
        %v815 = vadd.f32 %v685, %v686
        %v816 = vadd.f32 %v815, %v687
        %v817 = vadd.f32 %v816, %v688
        %v818 = vadd.f32 %v817, %v689
        %v819 = vadd.f32 %v818, %v690
        %v820 = vsel %vm369, %v691, 0.0
        %v821 = vadd.f32 %v819, %v820
        %822 = vadd.xlane.f32.xlu0 %v821
        %v823 = vpop.xlane.xlu0 %822
        %v824 = vadd.f32 %v692, %v693
        %v825 = vadd.f32 %v824, %v694
        %v826 = vadd.f32 %v825, %v695
        %v827 = vadd.f32 %v826, %v696
        %v828 = vadd.f32 %v827, %v697
        %v829 = vsel %vm369, %v698, 0.0
        %v830 = vadd.f32 %v828, %v829
        %831 = vadd.xlane.f32.xlu0 %v830
        %v832 = vpop.xlane.xlu0 %831
        %v833 = vadd.f32 %v699, %v700
        %v834 = vadd.f32 %v833, %v701
        %v835 = vadd.f32 %v834, %v702
        %v836 = vadd.f32 %v835, %v703
        %v837 = vadd.f32 %v836, %v704
        %v838 = vsel %vm369, %v705, 0.0
        %v839 = vadd.f32 %v837, %v838
        %840 = vadd.xlane.f32.xlu0 %v839
        %v841 = vpop.xlane.xlu0 %840
        %v842 = vadd.f32 %v706, %v707
        %v843 = vadd.f32 %v842, %v708
        %v844 = vadd.f32 %v843, %v709
        %v845 = vadd.f32 %v844, %v710
        %v846 = vadd.f32 %v845, %v711
        %v847 = vsel %vm369, %v712, 0.0
        %v848 = vadd.f32 %v846, %v847
        %849 = vadd.xlane.f32.xlu0 %v848
        %v850 = vpop.xlane.xlu0 %849
        %v851 = vadd.f32 %v713, %v714
        %v852 = vadd.f32 %v851, %v715
        %v853 = vadd.f32 %v852, %v716
        %v854 = vadd.f32 %v853, %v717
        %v855 = vadd.f32 %v854, %v718
        %v856 = vsel %vm369, %v719, 0.0
        %v857 = vadd.f32 %v855, %v856
        %858 = vadd.xlane.f32.xlu0 %v857
        %v859 = vpop.xlane.xlu0 %858
        %v860 = vadd.f32 %v720, %v721
        %v861 = vadd.f32 %v860, %v722
        %v862 = vadd.f32 %v861, %v723
        %v863 = vadd.f32 %v862, %v724
        %v864 = vadd.f32 %v863, %v725
        %v865 = vsel %vm369, %v726, 0.0
        %v866 = vadd.f32 %v864, %v865
        %867 = vadd.xlane.f32.xlu0 %v866
        %v868 = vpop.xlane.xlu0 %867
        %v869 = vadd.f32 %v727, %v728
        %v870 = vadd.f32 %v869, %v729
        %v871 = vadd.f32 %v870, %v730
        %v872 = vadd.f32 %v871, %v731
        %v873 = vadd.f32 %v872, %v732
        %v874 = vsel %vm369, %v733, 0.0
        %v875 = vadd.f32 %v873, %v874
        %876 = vadd.xlane.f32.xlu0 %v875
        %v877 = vpop.xlane.xlu0 %876
        %v878 = vadd.f32 %v734, %v735
        %v879 = vadd.f32 %v878, %v736
        %v880 = vadd.f32 %v879, %v737
        %v881 = vadd.f32 %v880, %v738
        %v882 = vadd.f32 %v881, %v739
        %v883 = vsel %vm369, %v740, 0.0
        %v884 = vadd.f32 %v882, %v883
        %885 = vadd.xlane.f32.xlu0 %v884
        %v886 = vpop.xlane.xlu0 %885
        %v887 = vadd.f32 %v741, %v742
        %v888 = vadd.f32 %v887, %v743
        %v889 = vadd.f32 %v888, %v744
        %v890 = vadd.f32 %v889, %v745
        %v891 = vadd.f32 %v890, %v746
        %v892 = vsel %vm369, %v747, 0.0
        %v893 = vadd.f32 %v891, %v892
        %894 = vadd.xlane.f32.xlu0 %v893
        %v895 = vpop.xlane.xlu0 %894
        %v896 = vadd.f32 %v748, %v749
        %v897 = vadd.f32 %v896, %v750
        %v898 = vadd.f32 %v897, %v751
        %v899 = vadd.f32 %v898, %v752
        %v900 = vadd.f32 %v899, %v753
        %v901 = vsel %vm369, %v754, 0.0
        %v902 = vadd.f32 %v900, %v901
        %903 = vadd.xlane.f32.xlu0 %v902
        %v904 = vpop.xlane.xlu0 %903
        %v905 = vadd.f32 %v755, %v756
        %v906 = vadd.f32 %v905, %v757
        %v907 = vadd.f32 %v906, %v758
        %v908 = vadd.f32 %v907, %v759
        %v909 = vadd.f32 %v908, %v760
        %v910 = vsel %vm369, %v761, 0.0
        %v911 = vadd.f32 %v909, %v910
        %912 = vadd.xlane.f32.xlu0 %v911
        %v913 = vpop.xlane.xlu0 %912
        %v914 = vadd.f32 %v762, %v763
        %v915 = vadd.f32 %v914, %v764
        %v916 = vadd.f32 %v915, %v765
        %v917 = vadd.f32 %v916, %v766
        %v918 = vadd.f32 %v917, %v767
        %v919 = vsel %vm369, %v768, 0.0
        %v920 = vadd.f32 %v918, %v919
        %921 = vadd.xlane.f32.xlu0 %v920
        %v922 = vpop.xlane.xlu0 %921
        %v923 = vadd.f32 %v769, %v770
        %v924 = vadd.f32 %v923, %v771
        %v925 = vadd.f32 %v924, %v772
        %v926 = vadd.f32 %v925, %v773
        %v927 = vadd.f32 %v926, %v774
        %v928 = vsel %vm369, %v775, 0.0
        %v929 = vadd.f32 %v927, %v928
        %930 = vadd.xlane.f32.xlu0 %v929
        %v931 = vpop.xlane.xlu0 %930
        %v932 = vadd.f32 %v776, %v777
        %v933 = vadd.f32 %v932, %v778
        %v934 = vadd.f32 %v933, %v779
        %v935 = vadd.f32 %v934, %v780
        %v936 = vadd.f32 %v935, %v781
        %v937 = vsel %vm369, %v782, 0.0
        %v938 = vadd.f32 %v936, %v937
        %939 = vadd.xlane.f32.xlu0 %v938
        %v940 = vpop.xlane.xlu0 %939
        %v941 = vadd.f32 %v783, %v784
        %v942 = vadd.f32 %v941, %v785
        %v943 = vadd.f32 %v942, %v786
        %v944 = vadd.f32 %v943, %v787
        %v945 = vadd.f32 %v944, %v788
        %v946 = vsel %vm369, %v789, 0.0
        %v947 = vadd.f32 %v945, %v946
        %948 = vadd.xlane.f32.xlu0 %v947
        %v949 = vpop.xlane.xlu0 %948
        %v950 = vadd.f32 %v790, %v791
        %v951 = vadd.f32 %v950, %v792
        %v952 = vadd.f32 %v951, %v793
        %v953 = vadd.f32 %v952, %v794
        %v954 = vadd.f32 %v953, %v795
        %v955 = vsel %vm369, %v796, 0.0
        %v956 = vadd.f32 %v954, %v955
        %957 = vadd.xlane.f32.xlu0 %v956
        %v958 = vpop.xlane.xlu0 %957
        %v959 = vmul.f32 %v805, 0.0012755102
        %v960 = vmul.f32 %v814, 0.0012755102
        %v961 = vmul.f32 %v823, 0.0012755102
        %v962 = vmul.f32 %v832, 0.0012755102
        %v963 = vmul.f32 %v841, 0.0012755102
        %v964 = vmul.f32 %v850, 0.0012755102
        %v965 = vmul.f32 %v859, 0.0012755102
        %v966 = vmul.f32 %v868, 0.0012755102
        %v967 = vmul.f32 %v877, 0.0012755102
        %v968 = vmul.f32 %v886, 0.0012755102
        %v969 = vmul.f32 %v895, 0.0012755102
        %v970 = vmul.f32 %v904, 0.0012755102
        %v971 = vmul.f32 %v913, 0.0012755102
        %v972 = vmul.f32 %v922, 0.0012755102
        %v973 = vmul.f32 %v931, 0.0012755102
        %v974 = vmul.f32 %v940, 0.0012755102
        %v975 = vmul.f32 %v949, 0.0012755102
        %v976 = vmul.f32 %v958, 0.0012755102
        %v977 = vadd.f32 %v959, 0.001
        %v978 = vadd.f32 %v960, 0.001
        %v979 = vadd.f32 %v961, 0.001
        %v980 = vadd.f32 %v962, 0.001
        %v981 = vadd.f32 %v963, 0.001
        %v982 = vadd.f32 %v964, 0.001
        %v983 = vadd.f32 %v965, 0.001
        %v984 = vadd.f32 %v966, 0.001
        %v985 = vadd.f32 %v967, 0.001
        %v986 = vadd.f32 %v968, 0.001
        %v987 = vadd.f32 %v969, 0.001
        %v988 = vadd.f32 %v970, 0.001
        %v989 = vadd.f32 %v971, 0.001
        %v990 = vadd.f32 %v972, 0.001
        %v991 = vadd.f32 %v973, 0.001
        %v992 = vadd.f32 %v974, 0.001
        %v993 = vadd.f32 %v975, 0.001
        %v994 = vadd.f32 %v976, 0.001
        %v995 = vrsqrt.pop %v977
        %v996 = vmul.f32 %v995, %v977
        %v997 = vmul.f32 %v996, %v995
        %v998 = vmul.f32 0.5, %v997
        %v999 = vsub.f32 1.5, %v998
        %v1000 = vmul.f32 %v995, %v999
        %vm1001 = vweird.f32 %v977
        %vm1002 = vweird.f32 %v995
        %vm1003 = vmor %vm1001, %vm1002
        %v1004 = vsel %vm1003, %v995, %v1000
        %v1005 = vrsqrt.pop %v978
        %v1006 = vmul.f32 %v1005, %v978
        %v1007 = vmul.f32 %v1006, %v1005
        %v1008 = vmul.f32 0.5, %v1007
        %v1009 = vsub.f32 1.5, %v1008
        %v1010 = vmul.f32 %v1005, %v1009
        %vm1011 = vweird.f32 %v978
        %vm1012 = vweird.f32 %v1005
        %vm1013 = vmor %vm1011, %vm1012
        %v1014 = vsel %vm1013, %v1005, %v1010
        %v1015 = vrsqrt.pop %v979
        %v1016 = vmul.f32 %v1015, %v979
        %v1017 = vmul.f32 %v1016, %v1015
        %v1018 = vmul.f32 0.5, %v1017
        %v1019 = vsub.f32 1.5, %v1018
        %v1020 = vmul.f32 %v1015, %v1019
        %vm1021 = vweird.f32 %v979
        %vm1022 = vweird.f32 %v1015
        %vm1023 = vmor %vm1021, %vm1022
        %v1024 = vsel %vm1023, %v1015, %v1020
        %v1025 = vrsqrt.pop %v980
        %v1026 = vmul.f32 %v1025, %v980
        %v1027 = vmul.f32 %v1026, %v1025
        %v1028 = vmul.f32 0.5, %v1027
        %v1029 = vsub.f32 1.5, %v1028
        %v1030 = vmul.f32 %v1025, %v1029
        %vm1031 = vweird.f32 %v980
        %vm1032 = vweird.f32 %v1025
        %vm1033 = vmor %vm1031, %vm1032
        %v1034 = vsel %vm1033, %v1025, %v1030
        %v1035 = vrsqrt.pop %v981
        %v1036 = vmul.f32 %v1035, %v981
        %v1037 = vmul.f32 %v1036, %v1035
        %v1038 = vmul.f32 0.5, %v1037
        %v1039 = vsub.f32 1.5, %v1038
        %v1040 = vmul.f32 %v1035, %v1039
        %vm1041 = vweird.f32 %v981
        %vm1042 = vweird.f32 %v1035
        %vm1043 = vmor %vm1041, %vm1042
        %v1044 = vsel %vm1043, %v1035, %v1040
        %v1045 = vrsqrt.pop %v982
        %v1046 = vmul.f32 %v1045, %v982
        %v1047 = vmul.f32 %v1046, %v1045
        %v1048 = vmul.f32 0.5, %v1047
        %v1049 = vsub.f32 1.5, %v1048
        %v1050 = vmul.f32 %v1045, %v1049
        %vm1051 = vweird.f32 %v982
        %vm1052 = vweird.f32 %v1045
        %vm1053 = vmor %vm1051, %vm1052
        %v1054 = vsel %vm1053, %v1045, %v1050
        %v1055 = vrsqrt.pop %v983
        %v1056 = vmul.f32 %v1055, %v983
        %v1057 = vmul.f32 %v1056, %v1055
        %v1058 = vmul.f32 0.5, %v1057
        %v1059 = vsub.f32 1.5, %v1058
        %v1060 = vmul.f32 %v1055, %v1059
        %vm1061 = vweird.f32 %v983
        %vm1062 = vweird.f32 %v1055
        %vm1063 = vmor %vm1061, %vm1062
        %v1064 = vsel %vm1063, %v1055, %v1060
        %v1065 = vrsqrt.pop %v984
        %v1066 = vmul.f32 %v1065, %v984
        %v1067 = vmul.f32 %v1066, %v1065
        %v1068 = vmul.f32 0.5, %v1067
        %v1069 = vsub.f32 1.5, %v1068
        %v1070 = vmul.f32 %v1065, %v1069
        %vm1071 = vweird.f32 %v984
        %vm1072 = vweird.f32 %v1065
        %vm1073 = vmor %vm1071, %vm1072
        %v1074 = vsel %vm1073, %v1065, %v1070
        %v1075 = vrsqrt.pop %v985
        %v1076 = vmul.f32 %v1075, %v985
        %v1077 = vmul.f32 %v1076, %v1075
        %v1078 = vmul.f32 0.5, %v1077
        %v1079 = vsub.f32 1.5, %v1078
        %v1080 = vmul.f32 %v1075, %v1079
        %vm1081 = vweird.f32 %v985
        %vm1082 = vweird.f32 %v1075
        %vm1083 = vmor %vm1081, %vm1082
        %v1084 = vsel %vm1083, %v1075, %v1080
        %v1085 = vrsqrt.pop %v986
        %v1086 = vmul.f32 %v1085, %v986
        %v1087 = vmul.f32 %v1086, %v1085
        %v1088 = vmul.f32 0.5, %v1087
        %v1089 = vsub.f32 1.5, %v1088
        %v1090 = vmul.f32 %v1085, %v1089
        %vm1091 = vweird.f32 %v986
        %vm1092 = vweird.f32 %v1085
        %vm1093 = vmor %vm1091, %vm1092
        %v1094 = vsel %vm1093, %v1085, %v1090
        %v1095 = vrsqrt.pop %v987
        %v1096 = vmul.f32 %v1095, %v987
        %v1097 = vmul.f32 %v1096, %v1095
        %v1098 = vmul.f32 0.5, %v1097
        %v1099 = vsub.f32 1.5, %v1098
        %v1100 = vmul.f32 %v1095, %v1099
        %vm1101 = vweird.f32 %v987
        %vm1102 = vweird.f32 %v1095
        %vm1103 = vmor %vm1101, %vm1102
        %v1104 = vsel %vm1103, %v1095, %v1100
        %v1105 = vrsqrt.pop %v988
        %v1106 = vmul.f32 %v1105, %v988
        %v1107 = vmul.f32 %v1106, %v1105
        %v1108 = vmul.f32 0.5, %v1107
        %v1109 = vsub.f32 1.5, %v1108
        %v1110 = vmul.f32 %v1105, %v1109
        %vm1111 = vweird.f32 %v988
        %vm1112 = vweird.f32 %v1105
        %vm1113 = vmor %vm1111, %vm1112
        %v1114 = vsel %vm1113, %v1105, %v1110
        %v1115 = vrsqrt.pop %v989
        %v1116 = vmul.f32 %v1115, %v989
        %v1117 = vmul.f32 %v1116, %v1115
        %v1118 = vmul.f32 0.5, %v1117
        %v1119 = vsub.f32 1.5, %v1118
        %v1120 = vmul.f32 %v1115, %v1119
        %vm1121 = vweird.f32 %v989
        %vm1122 = vweird.f32 %v1115
        %vm1123 = vmor %vm1121, %vm1122
        %v1124 = vsel %vm1123, %v1115, %v1120
        %v1125 = vrsqrt.pop %v990
        %v1126 = vmul.f32 %v1125, %v990
        %v1127 = vmul.f32 %v1126, %v1125
        %v1128 = vmul.f32 0.5, %v1127
        %v1129 = vsub.f32 1.5, %v1128
        %v1130 = vmul.f32 %v1125, %v1129
        %vm1131 = vweird.f32 %v990
        %vm1132 = vweird.f32 %v1125
        %vm1133 = vmor %vm1131, %vm1132
        %v1134 = vsel %vm1133, %v1125, %v1130
        %v1135 = vrsqrt.pop %v991
        %v1136 = vmul.f32 %v1135, %v991
        %v1137 = vmul.f32 %v1136, %v1135
        %v1138 = vmul.f32 0.5, %v1137
        %v1139 = vsub.f32 1.5, %v1138
        %v1140 = vmul.f32 %v1135, %v1139
        %vm1141 = vweird.f32 %v991
        %vm1142 = vweird.f32 %v1135
        %vm1143 = vmor %vm1141, %vm1142
        %v1144 = vsel %vm1143, %v1135, %v1140
        %v1145 = vrsqrt.pop %v992
        %v1146 = vmul.f32 %v1145, %v992
        %v1147 = vmul.f32 %v1146, %v1145
        %v1148 = vmul.f32 0.5, %v1147
        %v1149 = vsub.f32 1.5, %v1148
        %v1150 = vmul.f32 %v1145, %v1149
        %vm1151 = vweird.f32 %v992
        %vm1152 = vweird.f32 %v1145
        %vm1153 = vmor %vm1151, %vm1152
        %v1154 = vsel %vm1153, %v1145, %v1150
        %v1155 = vrsqrt.pop %v993
        %v1156 = vmul.f32 %v1155, %v993
        %v1157 = vmul.f32 %v1156, %v1155
        %v1158 = vmul.f32 0.5, %v1157
        %v1159 = vsub.f32 1.5, %v1158
        %v1160 = vmul.f32 %v1155, %v1159
        %vm1161 = vweird.f32 %v993
        %vm1162 = vweird.f32 %v1155
        %vm1163 = vmor %vm1161, %vm1162
        %v1164 = vsel %vm1163, %v1155, %v1160
        %v1165 = vrsqrt.pop %v994
        %v1166 = vmul.f32 %v1165, %v994
        %v1167 = vmul.f32 %v1166, %v1165
        %v1168 = vmul.f32 0.5, %v1167
        %v1169 = vsub.f32 1.5, %v1168
        %v1170 = vmul.f32 %v1165, %v1169
        %vm1171 = vweird.f32 %v994
        %vm1172 = vweird.f32 %v1165
        %vm1173 = vmor %vm1171, %vm1172
        %v1174 = vsel %vm1173, %v1165, %v1170
        %v1175 = vld [vmem:[%s229] sm:$0xff]
        %v1176 = vld [vmem:[%s229 + $0x8] sm:$0xff]
        %v1177 = vld [vmem:[%s229 + $0x10] sm:$0xff]
        %v1178 = vld [vmem:[%s229 + $0x18] sm:$0xff]
        %v1179 = vld [vmem:[%s229 + $0x20] sm:$0xff]
        %v1180 = vld [vmem:[%s229 + $0x28] sm:$0xff]
        %v1181 = vld [vmem:[%s229 + $0x30] sm:$0xff]
        %v1182 = vld [vmem:[%s229 + $0x38] sm:$0xff]
        %v1183 = vld [vmem:[%s229 + $0x40] sm:$0xff]
        %v1184 = vld [vmem:[%s229 + $0x48] sm:$0xff]
        %v1185 = vld [vmem:[%s229 + $0x50] sm:$0xff]
        %v1186 = vld [vmem:[%s229 + $0x58] sm:$0xff]
        %v1187 = vld [vmem:[%s229 + $0x60] sm:$0xff]
        %v1188 = vld [vmem:[%s229 + $0x68] sm:$0xff]
        %v1189 = vld [vmem:[%s229 + $0x70] sm:$0xff]
        %v1190 = vld [vmem:[%s229 + $0x78] sm:$0xff]
        %v1191 = vld [vmem:[%s229 + $0x80] sm:$0xff]
        %v1192 = vld [vmem:[%s229 + $0x88] sm:$0xff]
        %v1193 = vmul.f32 %v1004, %v1175
        %v1194 = vmul.f32 %v1014, %v1176
        %v1195 = vmul.f32 %v1024, %v1177
        %v1196 = vmul.f32 %v1034, %v1178
        %v1197 = vmul.f32 %v1044, %v1179
        %v1198 = vmul.f32 %v1054, %v1180
        %v1199 = vmul.f32 %v1064, %v1181
        %v1200 = vmul.f32 %v1074, %v1182
        %v1201 = vmul.f32 %v1084, %v1183
        %v1202 = vmul.f32 %v1094, %v1184
        %v1203 = vmul.f32 %v1104, %v1185
        %v1204 = vmul.f32 %v1114, %v1186
        %v1205 = vmul.f32 %v1124, %v1187
        %v1206 = vmul.f32 %v1134, %v1188
        %v1207 = vmul.f32 %v1144, %v1189
        %v1208 = vmul.f32 %v1154, %v1190
        %v1209 = vmul.f32 %v1164, %v1191
        %v1210 = vmul.f32 %v1174, %v1192
        %v1211 = vld [vmem:[%s235] sm:$0xff]
        %v1212 = vld [vmem:[%s235 + $0x8] sm:$0xff]
        %v1213 = vld [vmem:[%s235 + $0x10] sm:$0xff]
        %v1214 = vld [vmem:[%s235 + $0x18] sm:$0xff]
        %v1215 = vld [vmem:[%s235 + $0x20] sm:$0xff]
        %v1216 = vld [vmem:[%s235 + $0x28] sm:$0xff]
        %v1217 = vld [vmem:[%s235 + $0x30] sm:$0xff]
        %v1218 = vld [vmem:[%s235 + $0x38] sm:$0xff]
        %v1219 = vld [vmem:[%s235 + $0x40] sm:$0xff]
        %v1220 = vld [vmem:[%s235 + $0x48] sm:$0xff]
        %v1221 = vld [vmem:[%s235 + $0x50] sm:$0xff]
        %v1222 = vld [vmem:[%s235 + $0x58] sm:$0xff]
        %v1223 = vld [vmem:[%s235 + $0x60] sm:$0xff]
        %v1224 = vld [vmem:[%s235 + $0x68] sm:$0xff]
        %v1225 = vld [vmem:[%s235 + $0x70] sm:$0xff]
        %v1226 = vld [vmem:[%s235 + $0x78] sm:$0xff]
        %v1227 = vld [vmem:[%s235 + $0x80] sm:$0xff]
        %v1228 = vld [vmem:[%s235 + $0x88] sm:$0xff]
        %v1229 = vmul.f32 %v527, %v1193
        %v1230 = vmul.f32 %v528, %v1194
        %v1231 = vmul.f32 %v529, %v1195
        %v1232 = vmul.f32 %v530, %v1196
        %v1233 = vmul.f32 %v531, %v1197
        %v1234 = vmul.f32 %v532, %v1198
        %v1235 = vmul.f32 %v533, %v1199
        %v1236 = vmul.f32 %v534, %v1200
        %v1237 = vmul.f32 %v535, %v1201
        %v1238 = vmul.f32 %v536, %v1202
        %v1239 = vmul.f32 %v537, %v1203
        %v1240 = vmul.f32 %v538, %v1204
        %v1241 = vmul.f32 %v539, %v1205
        %v1242 = vmul.f32 %v540, %v1206
        %v1243 = vmul.f32 %v541, %v1207
        %v1244 = vmul.f32 %v542, %v1208
        %v1245 = vmul.f32 %v543, %v1209
        %v1246 = vmul.f32 %v544, %v1210
        %v1247 = vsub.f32 %v1211, %v1229
        %v1248 = vsub.f32 %v1212, %v1230
        %v1249 = vsub.f32 %v1213, %v1231
        %v1250 = vsub.f32 %v1214, %v1232
        %v1251 = vsub.f32 %v1215, %v1233
        %v1252 = vsub.f32 %v1216, %v1234
        %v1253 = vsub.f32 %v1217, %v1235
        %v1254 = vsub.f32 %v1218, %v1236
        %v1255 = vsub.f32 %v1219, %v1237
        %v1256 = vsub.f32 %v1220, %v1238
        %v1257 = vsub.f32 %v1221, %v1239
        %v1258 = vsub.f32 %v1222, %v1240
        %v1259 = vsub.f32 %v1223, %v1241
        %v1260 = vsub.f32 %v1224, %v1242
        %v1261 = vsub.f32 %v1225, %v1243
        %v1262 = vsub.f32 %v1226, %v1244
        %v1263 = vsub.f32 %v1227, %v1245
        %v1264 = vsub.f32 %v1228, %v1246
        %1266 = vset.pattern.permute.xlu0 0
        %1267 = vperm.xlu0 %1266, %v1193
        %v1268 = vpop.permute.xlu0 %1267
        %1271 = vset.pattern.permute.xlu0 0
        %1272 = vperm.xlu0 %1271, %v1194
        %v1273 = vpop.permute.xlu0 %1272
        %1276 = vset.pattern.permute.xlu0 0
        %1277 = vperm.xlu0 %1276, %v1195
        %v1278 = vpop.permute.xlu0 %1277
        %1281 = vset.pattern.permute.xlu0 0
        %1282 = vperm.xlu0 %1281, %v1196
        %v1283 = vpop.permute.xlu0 %1282
        %1286 = vset.pattern.permute.xlu0 0
        %1287 = vperm.xlu0 %1286, %v1197
        %v1288 = vpop.permute.xlu0 %1287
        %1291 = vset.pattern.permute.xlu0 0
        %1292 = vperm.xlu0 %1291, %v1198
        %v1293 = vpop.permute.xlu0 %1292
        %1296 = vset.pattern.permute.xlu0 0
        %1297 = vperm.xlu0 %1296, %v1199
        %v1298 = vpop.permute.xlu0 %1297
        %1301 = vset.pattern.permute.xlu0 0
        %1302 = vperm.xlu0 %1301, %v1200
        %v1303 = vpop.permute.xlu0 %1302
        %1306 = vset.pattern.permute.xlu0 0
        %1307 = vperm.xlu0 %1306, %v1201
        %v1308 = vpop.permute.xlu0 %1307
        %1311 = vset.pattern.permute.xlu0 0
        %1312 = vperm.xlu0 %1311, %v1202
        %v1313 = vpop.permute.xlu0 %1312
        %1316 = vset.pattern.permute.xlu0 0
        %1317 = vperm.xlu0 %1316, %v1203
        %v1318 = vpop.permute.xlu0 %1317
        %1321 = vset.pattern.permute.xlu0 0
        %1322 = vperm.xlu0 %1321, %v1204
        %v1323 = vpop.permute.xlu0 %1322
        %1326 = vset.pattern.permute.xlu0 0
        %1327 = vperm.xlu0 %1326, %v1205
        %v1328 = vpop.permute.xlu0 %1327
        %1331 = vset.pattern.permute.xlu0 0
        %1332 = vperm.xlu0 %1331, %v1206
        %v1333 = vpop.permute.xlu0 %1332
        %1336 = vset.pattern.permute.xlu0 0
        %1337 = vperm.xlu0 %1336, %v1207
        %v1338 = vpop.permute.xlu0 %1337
        %1341 = vset.pattern.permute.xlu0 0
        %1342 = vperm.xlu0 %1341, %v1208
        %v1343 = vpop.permute.xlu0 %1342
        %1346 = vset.pattern.permute.xlu0 0
        %1347 = vperm.xlu0 %1346, %v1209
        %v1348 = vpop.permute.xlu0 %1347
        %1351 = vset.pattern.permute.xlu0 0
        %1352 = vperm.xlu0 %1351, %v1210
        %v1353 = vpop.permute.xlu0 %1352
        %v1355 = vmul.f32 %v238, %v1268
        %v1356 = vmul.f32 %v239, %v1268
        %v1357 = vmul.f32 %v240, %v1268
        %v1358 = vmul.f32 %v241, %v1268
        %v1359 = vmul.f32 %v242, %v1268
        %v1360 = vmul.f32 %v243, %v1268
        %v1361 = vmul.f32 %v244, %v1268
        %v1362 = vmul.f32 %v245, %v1273
        %v1363 = vmul.f32 %v246, %v1273
        %v1364 = vmul.f32 %v247, %v1273
        %v1365 = vmul.f32 %v248, %v1273
        %v1366 = vmul.f32 %v249, %v1273
        %v1367 = vmul.f32 %v250, %v1273
        %v1368 = vmul.f32 %v251, %v1273
        %v1369 = vmul.f32 %v252, %v1278
        %v1370 = vmul.f32 %v253, %v1278
        %v1371 = vmul.f32 %v254, %v1278
        %v1372 = vmul.f32 %v255, %v1278
        %v1373 = vmul.f32 %v256, %v1278
        %v1374 = vmul.f32 %v257, %v1278
        %v1375 = vmul.f32 %v258, %v1278
        %v1376 = vmul.f32 %v259, %v1283
        %v1377 = vmul.f32 %v260, %v1283
        %v1378 = vmul.f32 %v261, %v1283
        %v1379 = vmul.f32 %v262, %v1283
        %v1380 = vmul.f32 %v263, %v1283
        %v1381 = vmul.f32 %v264, %v1283
        %v1382 = vmul.f32 %v265, %v1283
        %v1383 = vmul.f32 %v266, %v1288
        %v1384 = vmul.f32 %v267, %v1288
        %v1385 = vmul.f32 %v268, %v1288
        %v1386 = vmul.f32 %v269, %v1288
        %v1387 = vmul.f32 %v270, %v1288
        %v1388 = vmul.f32 %v271, %v1288
        %v1389 = vmul.f32 %v272, %v1288
        %v1390 = vmul.f32 %v273, %v1293
        %v1391 = vmul.f32 %v274, %v1293
        %v1392 = vmul.f32 %v275, %v1293
        %v1393 = vmul.f32 %v276, %v1293
        %v1394 = vmul.f32 %v277, %v1293
        %v1395 = vmul.f32 %v278, %v1293
        %v1396 = vmul.f32 %v279, %v1293
        %v1397 = vmul.f32 %v280, %v1298
        %v1398 = vmul.f32 %v281, %v1298
        %v1399 = vmul.f32 %v282, %v1298
        %v1400 = vmul.f32 %v283, %v1298
        %v1401 = vmul.f32 %v284, %v1298
        %v1402 = vmul.f32 %v285, %v1298
        %v1403 = vmul.f32 %v286, %v1298
        %v1404 = vmul.f32 %v287, %v1303
        %v1405 = vmul.f32 %v288, %v1303
        %v1406 = vmul.f32 %v289, %v1303
        %v1407 = vmul.f32 %v290, %v1303
        %v1408 = vmul.f32 %v291, %v1303
        %v1409 = vmul.f32 %v292, %v1303
        %v1410 = vmul.f32 %v293, %v1303
        %v1411 = vmul.f32 %v294, %v1308
        %v1412 = vmul.f32 %v295, %v1308
        %v1413 = vmul.f32 %v296, %v1308
        %v1414 = vmul.f32 %v297, %v1308
        %v1415 = vmul.f32 %v298, %v1308
        %v1416 = vmul.f32 %v299, %v1308
        %v1417 = vmul.f32 %v300, %v1308
        %v1418 = vmul.f32 %v301, %v1313
        %v1419 = vmul.f32 %v302, %v1313
        %v1420 = vmul.f32 %v303, %v1313
        %v1421 = vmul.f32 %v304, %v1313
        %v1422 = vmul.f32 %v305, %v1313
        %v1423 = vmul.f32 %v306, %v1313
        %v1424 = vmul.f32 %v307, %v1313
        %v1425 = vmul.f32 %v308, %v1318
        %v1426 = vmul.f32 %v309, %v1318
        %v1427 = vmul.f32 %v310, %v1318
        %v1428 = vmul.f32 %v311, %v1318
        %v1429 = vmul.f32 %v312, %v1318
        %v1430 = vmul.f32 %v313, %v1318
        %v1431 = vmul.f32 %v314, %v1318
        %v1432 = vmul.f32 %v315, %v1323
        %v1433 = vmul.f32 %v316, %v1323
        %v1434 = vmul.f32 %v317, %v1323
        %v1435 = vmul.f32 %v318, %v1323
        %v1436 = vmul.f32 %v319, %v1323
        %v1437 = vmul.f32 %v320, %v1323
        %v1438 = vmul.f32 %v321, %v1323
        %v1439 = vmul.f32 %v322, %v1328
        %v1440 = vmul.f32 %v323, %v1328
        %v1441 = vmul.f32 %v324, %v1328
        %v1442 = vmul.f32 %v325, %v1328
        %v1443 = vmul.f32 %v326, %v1328
        %v1444 = vmul.f32 %v327, %v1328
        %v1445 = vmul.f32 %v328, %v1328
        %v1446 = vmul.f32 %v329, %v1333
        %v1447 = vmul.f32 %v330, %v1333
        %v1448 = vmul.f32 %v331, %v1333
        %v1449 = vmul.f32 %v332, %v1333
        %v1450 = vmul.f32 %v333, %v1333
        %v1451 = vmul.f32 %v334, %v1333
        %v1452 = vmul.f32 %v335, %v1333
        %v1453 = vmul.f32 %v336, %v1338
        %v1454 = vmul.f32 %v337, %v1338
        %v1455 = vmul.f32 %v338, %v1338
        %v1456 = vmul.f32 %v339, %v1338
        %v1457 = vmul.f32 %v340, %v1338
        %v1458 = vmul.f32 %v341, %v1338
        %v1459 = vmul.f32 %v342, %v1338
        %v1460 = vmul.f32 %v343, %v1343
        %v1461 = vmul.f32 %v344, %v1343
        %v1462 = vmul.f32 %v345, %v1343
        %v1463 = vmul.f32 %v346, %v1343
        %v1464 = vmul.f32 %v347, %v1343
        %v1465 = vmul.f32 %v348, %v1343
        %v1466 = vmul.f32 %v349, %v1343
        %v1467 = vmul.f32 %v350, %v1348
        %v1468 = vmul.f32 %v351, %v1348
        %v1469 = vmul.f32 %v352, %v1348
        %v1470 = vmul.f32 %v353, %v1348
        %v1471 = vmul.f32 %v354, %v1348
        %v1472 = vmul.f32 %v355, %v1348
        %v1473 = vmul.f32 %v356, %v1348
        %v1474 = vmul.f32 %v357, %v1353
        %v1475 = vmul.f32 %v358, %v1353
        %v1476 = vmul.f32 %v359, %v1353
        %v1477 = vmul.f32 %v360, %v1353
        %v1478 = vmul.f32 %v361, %v1353
        %v1479 = vmul.f32 %v362, %v1353
        %v1480 = vmul.f32 %v363, %v1353
        %1482 = vset.pattern.permute.xlu0 0
        %1483 = vperm.xlu0 %1482, %v1247
        %v1484 = vpop.permute.xlu0 %1483
        %1487 = vset.pattern.permute.xlu0 0
        %1488 = vperm.xlu0 %1487, %v1248
        %v1489 = vpop.permute.xlu0 %1488
        %1492 = vset.pattern.permute.xlu0 0
        %1493 = vperm.xlu0 %1492, %v1249
        %v1494 = vpop.permute.xlu0 %1493
        %1497 = vset.pattern.permute.xlu0 0
        %1498 = vperm.xlu0 %1497, %v1250
        %v1499 = vpop.permute.xlu0 %1498
        %1502 = vset.pattern.permute.xlu0 0
        %1503 = vperm.xlu0 %1502, %v1251
        %v1504 = vpop.permute.xlu0 %1503
        %1507 = vset.pattern.permute.xlu0 0
        %1508 = vperm.xlu0 %1507, %v1252
        %v1509 = vpop.permute.xlu0 %1508
        %1512 = vset.pattern.permute.xlu0 0
        %1513 = vperm.xlu0 %1512, %v1253
        %v1514 = vpop.permute.xlu0 %1513
        %1517 = vset.pattern.permute.xlu0 0
        %1518 = vperm.xlu0 %1517, %v1254
        %v1519 = vpop.permute.xlu0 %1518
        %1522 = vset.pattern.permute.xlu0 0
        %1523 = vperm.xlu0 %1522, %v1255
        %v1524 = vpop.permute.xlu0 %1523
        %1527 = vset.pattern.permute.xlu0 0
        %1528 = vperm.xlu0 %1527, %v1256
        %v1529 = vpop.permute.xlu0 %1528
        %1532 = vset.pattern.permute.xlu0 0
        %1533 = vperm.xlu0 %1532, %v1257
        %v1534 = vpop.permute.xlu0 %1533
        %1537 = vset.pattern.permute.xlu0 0
        %1538 = vperm.xlu0 %1537, %v1258
        %v1539 = vpop.permute.xlu0 %1538
        %1542 = vset.pattern.permute.xlu0 0
        %1543 = vperm.xlu0 %1542, %v1259
        %v1544 = vpop.permute.xlu0 %1543
        %1547 = vset.pattern.permute.xlu0 0
        %1548 = vperm.xlu0 %1547, %v1260
        %v1549 = vpop.permute.xlu0 %1548
        %1552 = vset.pattern.permute.xlu0 0
        %1553 = vperm.xlu0 %1552, %v1261
        %v1554 = vpop.permute.xlu0 %1553
        %1557 = vset.pattern.permute.xlu0 0
        %1558 = vperm.xlu0 %1557, %v1262
        %v1559 = vpop.permute.xlu0 %1558
        %1562 = vset.pattern.permute.xlu0 0
        %1563 = vperm.xlu0 %1562, %v1263
        %v1564 = vpop.permute.xlu0 %1563
        %1567 = vset.pattern.permute.xlu0 0
        %1568 = vperm.xlu0 %1567, %v1264
        %v1569 = vpop.permute.xlu0 %1568
        %v1571 = vadd.f32 %v1355, %v1484
        %v1572 = vadd.f32 %v1356, %v1484
        %v1573 = vadd.f32 %v1357, %v1484
        %v1574 = vadd.f32 %v1358, %v1484
        %v1575 = vadd.f32 %v1359, %v1484
        %v1576 = vadd.f32 %v1360, %v1484
        %v1577 = vadd.f32 %v1361, %v1484
        %v1578 = vadd.f32 %v1362, %v1489
        %v1579 = vadd.f32 %v1363, %v1489
        %v1580 = vadd.f32 %v1364, %v1489
        %v1581 = vadd.f32 %v1365, %v1489
        %v1582 = vadd.f32 %v1366, %v1489
        %v1583 = vadd.f32 %v1367, %v1489
        %v1584 = vadd.f32 %v1368, %v1489
        %v1585 = vadd.f32 %v1369, %v1494
        %v1586 = vadd.f32 %v1370, %v1494
        %v1587 = vadd.f32 %v1371, %v1494
        %v1588 = vadd.f32 %v1372, %v1494
        %v1589 = vadd.f32 %v1373, %v1494
        %v1590 = vadd.f32 %v1374, %v1494
        %v1591 = vadd.f32 %v1375, %v1494
        %v1592 = vadd.f32 %v1376, %v1499
        %v1593 = vadd.f32 %v1377, %v1499
        %v1594 = vadd.f32 %v1378, %v1499
        %v1595 = vadd.f32 %v1379, %v1499
        %v1596 = vadd.f32 %v1380, %v1499
        %v1597 = vadd.f32 %v1381, %v1499
        %v1598 = vadd.f32 %v1382, %v1499
        %v1599 = vadd.f32 %v1383, %v1504
        %v1600 = vadd.f32 %v1384, %v1504
        %v1601 = vadd.f32 %v1385, %v1504
        %v1602 = vadd.f32 %v1386, %v1504
        %v1603 = vadd.f32 %v1387, %v1504
        %v1604 = vadd.f32 %v1388, %v1504
        %v1605 = vadd.f32 %v1389, %v1504
        %v1606 = vadd.f32 %v1390, %v1509
        %v1607 = vadd.f32 %v1391, %v1509
        %v1608 = vadd.f32 %v1392, %v1509
        %v1609 = vadd.f32 %v1393, %v1509
        %v1610 = vadd.f32 %v1394, %v1509
        %v1611 = vadd.f32 %v1395, %v1509
        %v1612 = vadd.f32 %v1396, %v1509
        %v1613 = vadd.f32 %v1397, %v1514
        %v1614 = vadd.f32 %v1398, %v1514
        %v1615 = vadd.f32 %v1399, %v1514
        %v1616 = vadd.f32 %v1400, %v1514
        %v1617 = vadd.f32 %v1401, %v1514
        %v1618 = vadd.f32 %v1402, %v1514
        %v1619 = vadd.f32 %v1403, %v1514
        %v1620 = vadd.f32 %v1404, %v1519
        %v1621 = vadd.f32 %v1405, %v1519
        %v1622 = vadd.f32 %v1406, %v1519
        %v1623 = vadd.f32 %v1407, %v1519
        %v1624 = vadd.f32 %v1408, %v1519
        %v1625 = vadd.f32 %v1409, %v1519
        %v1626 = vadd.f32 %v1410, %v1519
        %v1627 = vadd.f32 %v1411, %v1524
        %v1628 = vadd.f32 %v1412, %v1524
        %v1629 = vadd.f32 %v1413, %v1524
        %v1630 = vadd.f32 %v1414, %v1524
        %v1631 = vadd.f32 %v1415, %v1524
        %v1632 = vadd.f32 %v1416, %v1524
        %v1633 = vadd.f32 %v1417, %v1524
        %v1634 = vadd.f32 %v1418, %v1529
        %v1635 = vadd.f32 %v1419, %v1529
        %v1636 = vadd.f32 %v1420, %v1529
        %v1637 = vadd.f32 %v1421, %v1529
        %v1638 = vadd.f32 %v1422, %v1529
        %v1639 = vadd.f32 %v1423, %v1529
        %v1640 = vadd.f32 %v1424, %v1529
        %v1641 = vadd.f32 %v1425, %v1534
        %v1642 = vadd.f32 %v1426, %v1534
        %v1643 = vadd.f32 %v1427, %v1534
        %v1644 = vadd.f32 %v1428, %v1534
        %v1645 = vadd.f32 %v1429, %v1534
        %v1646 = vadd.f32 %v1430, %v1534
        %v1647 = vadd.f32 %v1431, %v1534
        %v1648 = vadd.f32 %v1432, %v1539
        %v1649 = vadd.f32 %v1433, %v1539
        %v1650 = vadd.f32 %v1434, %v1539
        %v1651 = vadd.f32 %v1435, %v1539
        %v1652 = vadd.f32 %v1436, %v1539
        %v1653 = vadd.f32 %v1437, %v1539
        %v1654 = vadd.f32 %v1438, %v1539
        %v1655 = vadd.f32 %v1439, %v1544
        %v1656 = vadd.f32 %v1440, %v1544
        %v1657 = vadd.f32 %v1441, %v1544
        %v1658 = vadd.f32 %v1442, %v1544
        %v1659 = vadd.f32 %v1443, %v1544
        %v1660 = vadd.f32 %v1444, %v1544
        %v1661 = vadd.f32 %v1445, %v1544
        %v1662 = vadd.f32 %v1446, %v1549
        %v1663 = vadd.f32 %v1447, %v1549
        %v1664 = vadd.f32 %v1448, %v1549
        %v1665 = vadd.f32 %v1449, %v1549
        %v1666 = vadd.f32 %v1450, %v1549
        %v1667 = vadd.f32 %v1451, %v1549
        %v1668 = vadd.f32 %v1452, %v1549
        %v1669 = vadd.f32 %v1453, %v1554
        %v1670 = vadd.f32 %v1454, %v1554
        %v1671 = vadd.f32 %v1455, %v1554
        %v1672 = vadd.f32 %v1456, %v1554
        %v1673 = vadd.f32 %v1457, %v1554
        %v1674 = vadd.f32 %v1458, %v1554
        %v1675 = vadd.f32 %v1459, %v1554
        %v1676 = vadd.f32 %v1460, %v1559
        %v1677 = vadd.f32 %v1461, %v1559
        %v1678 = vadd.f32 %v1462, %v1559
        %v1679 = vadd.f32 %v1463, %v1559
        %v1680 = vadd.f32 %v1464, %v1559
        %v1681 = vadd.f32 %v1465, %v1559
        %v1682 = vadd.f32 %v1466, %v1559
        %v1683 = vadd.f32 %v1467, %v1564
        %v1684 = vadd.f32 %v1468, %v1564
        %v1685 = vadd.f32 %v1469, %v1564
        %v1686 = vadd.f32 %v1470, %v1564
        %v1687 = vadd.f32 %v1471, %v1564
        %v1688 = vadd.f32 %v1472, %v1564
        %v1689 = vadd.f32 %v1473, %v1564
        %v1690 = vadd.f32 %v1474, %v1569
        %v1691 = vadd.f32 %v1475, %v1569
        %v1692 = vadd.f32 %v1476, %v1569
        %v1693 = vadd.f32 %v1477, %v1569
        %v1694 = vadd.f32 %v1478, %v1569
        %v1695 = vadd.f32 %v1479, %v1569
        %v1696 = vadd.f32 %v1480, %v1569
        %1697 = vst [vmem:[%s223] sm:$0xff] %v1571
        %1698 = vst [vmem:[%s223 + $0x8] sm:$0xff] %v1572
        %1699 = vst [vmem:[%s223 + $0x10] sm:$0xff] %v1573
        %1700 = vst [vmem:[%s223 + $0x18] sm:$0xff] %v1574
        %1701 = vst [vmem:[%s223 + $0x20] sm:$0xff] %v1575
        %1702 = vst [vmem:[%s223 + $0x28] sm:$0xff] %v1576
        %1703 = vst.msk [vmem:[%s223 + $0x30] sm:$0xff] %vm369, %v1577
        %1704 = vst [vmem:[%s223 + $0x38] sm:$0xff] %v1578
        %1705 = vst [vmem:[%s223 + $0x40] sm:$0xff] %v1579
        %1706 = vst [vmem:[%s223 + $0x48] sm:$0xff] %v1580
        %1707 = vst [vmem:[%s223 + $0x50] sm:$0xff] %v1581
        %1708 = vst [vmem:[%s223 + $0x58] sm:$0xff] %v1582
        %1709 = vst [vmem:[%s223 + $0x60] sm:$0xff] %v1583
        %1710 = vst.msk [vmem:[%s223 + $0x68] sm:$0xff] %vm369, %v1584
        %1711 = vst [vmem:[%s223 + $0x70] sm:$0xff] %v1585
        %1712 = vst [vmem:[%s223 + $0x78] sm:$0xff] %v1586
        %1713 = vst [vmem:[%s223 + $0x80] sm:$0xff] %v1587
        %1714 = vst [vmem:[%s223 + $0x88] sm:$0xff] %v1588
        %1715 = vst [vmem:[%s223 + $0x90] sm:$0xff] %v1589
        %1716 = vst [vmem:[%s223 + $0x98] sm:$0xff] %v1590
        %1717 = vst.msk [vmem:[%s223 + $0xa0] sm:$0xff] %vm369, %v1591
        %1718 = vst [vmem:[%s223 + $0xa8] sm:$0xff] %v1592
        %1719 = vst [vmem:[%s223 + $0xb0] sm:$0xff] %v1593
        %1720 = vst [vmem:[%s223 + $0xb8] sm:$0xff] %v1594
        %1721 = vst [vmem:[%s223 + $0xc0] sm:$0xff] %v1595
        %1722 = vst [vmem:[%s223 + $0xc8] sm:$0xff] %v1596
        %1723 = vst [vmem:[%s223 + $0xd0] sm:$0xff] %v1597
        %1724 = vst.msk [vmem:[%s223 + $0xd8] sm:$0xff] %vm369, %v1598
        %1725 = vst [vmem:[%s223 + $0xe0] sm:$0xff] %v1599
        %1726 = vst [vmem:[%s223 + $0xe8] sm:$0xff] %v1600
        %1727 = vst [vmem:[%s223 + $0xf0] sm:$0xff] %v1601
        %1728 = vst [vmem:[%s223 + $0xf8] sm:$0xff] %v1602
        %1729 = vst [vmem:[%s223 + $0x100] sm:$0xff] %v1603
        %1730 = vst [vmem:[%s223 + $0x108] sm:$0xff] %v1604
        %1731 = vst.msk [vmem:[%s223 + $0x110] sm:$0xff] %vm369, %v1605
        %1732 = vst [vmem:[%s223 + $0x118] sm:$0xff] %v1606
        %1733 = vst [vmem:[%s223 + $0x120] sm:$0xff] %v1607
        %1734 = vst [vmem:[%s223 + $0x128] sm:$0xff] %v1608
        %1735 = vst [vmem:[%s223 + $0x130] sm:$0xff] %v1609
        %1736 = vst [vmem:[%s223 + $0x138] sm:$0xff] %v1610
        %1737 = vst [vmem:[%s223 + $0x140] sm:$0xff] %v1611
        %1738 = vst.msk [vmem:[%s223 + $0x148] sm:$0xff] %vm369, %v1612
        %1739 = vst [vmem:[%s223 + $0x150] sm:$0xff] %v1613
        %1740 = vst [vmem:[%s223 + $0x158] sm:$0xff] %v1614
        %1741 = vst [vmem:[%s223 + $0x160] sm:$0xff] %v1615
        %1742 = vst [vmem:[%s223 + $0x168] sm:$0xff] %v1616
        %1743 = vst [vmem:[%s223 + $0x170] sm:$0xff] %v1617
        %1744 = vst [vmem:[%s223 + $0x178] sm:$0xff] %v1618
        %1745 = vst.msk [vmem:[%s223 + $0x180] sm:$0xff] %vm369, %v1619
        %1746 = vst [vmem:[%s223 + $0x188] sm:$0xff] %v1620
        %1747 = vst [vmem:[%s223 + $0x190] sm:$0xff] %v1621
        %1748 = vst [vmem:[%s223 + $0x198] sm:$0xff] %v1622
        %1749 = vst [vmem:[%s223 + $0x1a0] sm:$0xff] %v1623
        %1750 = vst [vmem:[%s223 + $0x1a8] sm:$0xff] %v1624
        %1751 = vst [vmem:[%s223 + $0x1b0] sm:$0xff] %v1625
        %1752 = vst.msk [vmem:[%s223 + $0x1b8] sm:$0xff] %vm369, %v1626
        %1753 = vst [vmem:[%s223 + $0x1c0] sm:$0xff] %v1627
        %1754 = vst [vmem:[%s223 + $0x1c8] sm:$0xff] %v1628
        %1755 = vst [vmem:[%s223 + $0x1d0] sm:$0xff] %v1629
        %1756 = vst [vmem:[%s223 + $0x1d8] sm:$0xff] %v1630
        %1757 = vst [vmem:[%s223 + $0x1e0] sm:$0xff] %v1631
        %1758 = vst [vmem:[%s223 + $0x1e8] sm:$0xff] %v1632
        %1759 = vst.msk [vmem:[%s223 + $0x1f0] sm:$0xff] %vm369, %v1633
        %1760 = vst [vmem:[%s223 + $0x1f8] sm:$0xff] %v1634
        %1761 = vst [vmem:[%s223 + $0x200] sm:$0xff] %v1635
        %1762 = vst [vmem:[%s223 + $0x208] sm:$0xff] %v1636
        %1763 = vst [vmem:[%s223 + $0x210] sm:$0xff] %v1637
        %1764 = vst [vmem:[%s223 + $0x218] sm:$0xff] %v1638
        %1765 = vst [vmem:[%s223 + $0x220] sm:$0xff] %v1639
        %1766 = vst.msk [vmem:[%s223 + $0x228] sm:$0xff] %vm369, %v1640
        %1767 = vst [vmem:[%s223 + $0x230] sm:$0xff] %v1641
        %1768 = vst [vmem:[%s223 + $0x238] sm:$0xff] %v1642
        %1769 = vst [vmem:[%s223 + $0x240] sm:$0xff] %v1643
        %1770 = vst [vmem:[%s223 + $0x248] sm:$0xff] %v1644
        %1771 = vst [vmem:[%s223 + $0x250] sm:$0xff] %v1645
        %1772 = vst [vmem:[%s223 + $0x258] sm:$0xff] %v1646
        %1773 = vst.msk [vmem:[%s223 + $0x260] sm:$0xff] %vm369, %v1647
        %1774 = vst [vmem:[%s223 + $0x268] sm:$0xff] %v1648
        %1775 = vst [vmem:[%s223 + $0x270] sm:$0xff] %v1649
        %1776 = vst [vmem:[%s223 + $0x278] sm:$0xff] %v1650
        %1777 = vst [vmem:[%s223 + $0x280] sm:$0xff] %v1651
        %1778 = vst [vmem:[%s223 + $0x288] sm:$0xff] %v1652
        %1779 = vst [vmem:[%s223 + $0x290] sm:$0xff] %v1653
        %1780 = vst.msk [vmem:[%s223 + $0x298] sm:$0xff] %vm369, %v1654
        %1781 = vst [vmem:[%s223 + $0x2a0] sm:$0xff] %v1655
        %1782 = vst [vmem:[%s223 + $0x2a8] sm:$0xff] %v1656
        %1783 = vst [vmem:[%s223 + $0x2b0] sm:$0xff] %v1657
        %1784 = vst [vmem:[%s223 + $0x2b8] sm:$0xff] %v1658
        %1785 = vst [vmem:[%s223 + $0x2c0] sm:$0xff] %v1659
        %1786 = vst [vmem:[%s223 + $0x2c8] sm:$0xff] %v1660
        %1787 = vst.msk [vmem:[%s223 + $0x2d0] sm:$0xff] %vm369, %v1661
        %1788 = vst [vmem:[%s223 + $0x2d8] sm:$0xff] %v1662
        %1789 = vst [vmem:[%s223 + $0x2e0] sm:$0xff] %v1663
        %1790 = vst [vmem:[%s223 + $0x2e8] sm:$0xff] %v1664
        %1791 = vst [vmem:[%s223 + $0x2f0] sm:$0xff] %v1665
        %1792 = vst [vmem:[%s223 + $0x2f8] sm:$0xff] %v1666
        %1793 = vst [vmem:[%s223 + $0x300] sm:$0xff] %v1667
        %1794 = vst.msk [vmem:[%s223 + $0x308] sm:$0xff] %vm369, %v1668
        %1795 = vst [vmem:[%s223 + $0x310] sm:$0xff] %v1669
        %1796 = vst [vmem:[%s223 + $0x318] sm:$0xff] %v1670
        %1797 = vst [vmem:[%s223 + $0x320] sm:$0xff] %v1671
        %1798 = vst [vmem:[%s223 + $0x328] sm:$0xff] %v1672
        %1799 = vst [vmem:[%s223 + $0x330] sm:$0xff] %v1673
        %1800 = vst [vmem:[%s223 + $0x338] sm:$0xff] %v1674
        %1801 = vst.msk [vmem:[%s223 + $0x340] sm:$0xff] %vm369, %v1675
        %1802 = vst [vmem:[%s223 + $0x348] sm:$0xff] %v1676
        %1803 = vst [vmem:[%s223 + $0x350] sm:$0xff] %v1677
        %1804 = vst [vmem:[%s223 + $0x358] sm:$0xff] %v1678
        %1805 = vst [vmem:[%s223 + $0x360] sm:$0xff] %v1679
        %1806 = vst [vmem:[%s223 + $0x368] sm:$0xff] %v1680
        %1807 = vst [vmem:[%s223 + $0x370] sm:$0xff] %v1681
        %1808 = vst.msk [vmem:[%s223 + $0x378] sm:$0xff] %vm369, %v1682
        %1809 = vst [vmem:[%s223 + $0x380] sm:$0xff] %v1683
        %1810 = vst [vmem:[%s223 + $0x388] sm:$0xff] %v1684
        %1811 = vst [vmem:[%s223 + $0x390] sm:$0xff] %v1685
        %1812 = vst [vmem:[%s223 + $0x398] sm:$0xff] %v1686
        %1813 = vst [vmem:[%s223 + $0x3a0] sm:$0xff] %v1687
        %1814 = vst [vmem:[%s223 + $0x3a8] sm:$0xff] %v1688
        %1815 = vst.msk [vmem:[%s223 + $0x3b0] sm:$0xff] %vm369, %v1689
        %1816 = vst [vmem:[%s223 + $0x3b8] sm:$0xff] %v1690
        %1817 = vst [vmem:[%s223 + $0x3c0] sm:$0xff] %v1691
        %1818 = vst [vmem:[%s223 + $0x3c8] sm:$0xff] %v1692
        %1819 = vst [vmem:[%s223 + $0x3d0] sm:$0xff] %v1693
        %1820 = vst [vmem:[%s223 + $0x3d8] sm:$0xff] %v1694
        %1821 = vst [vmem:[%s223 + $0x3e0] sm:$0xff] %v1695
        %1822 = vst.msk [vmem:[%s223 + $0x3e8] sm:$0xff] %vm369, %v1696
        %s1823 = sand.u32 %s106, 1
        %s1824 = scalar_lea.sflag [#allocation4], %s1823
        %s1825 = sand.u32 %s106, 1
        %s1826 = smul.addr %s1825, 1008
        %s1827 = scalar_lea.vmem [#allocation5], %s1826
        // Predicated region
        $region37: #{tpu_custom_call.1} parent=31 // pred_check
          %p1828 = pneg %p116
        $region38: #{tpu_custom_call.1} parent=31 // pred_check_branch
          %1830 = sbr.rel (%p1828) target = $region40
        $region39: #{tpu_custom_call.1} parent=31 // pred_region
          %s1831 = smul.u32 18, %s20
          %1833 = vsyncadd %s1824, 0
          %s1834 = smul.addr %s1831, 7
          %s1835 = smul.addr %s1834, 8
          %s1836 = scalar_lea.hbm %s3, %s1835
          %s1837 = sshll.u32 %s1827, 4
          %s1838 = int_to_ptr.vmem [resolvable:$true] %s1837
          %s1839 = sshll.u32 %s1836, 4
          %s1840 = int_to_ptr.hbm [resolvable:$true] %s1839
          %1845 = dma.vmem_to_hbm [thread:$0]  %s1838, 16128, %s1840, %s1824, 896, 896, 56
        $region40: #{tpu_custom_call.1} parent=31 // pred_fallthru
          _
      $region32: #{tpu_custom_call.1} parent=5 // pred_fallthru
        _
      %p1846 = scmp.le.s32.totalorder 2, %s15
      // Predicated region
      $region41: #{tpu_custom_call.1} parent=5 // pred_check
        %p1847 = pneg %p1846
      $region42: #{tpu_custom_call.1} parent=5 // pred_check_branch
        %1849 = sbr.rel (%p1847) target = $region44
      $region43: #{tpu_custom_call.1} parent=5 // pred_region
        %s1850 = ssub.s32 %s15, 2
        // Predicated region
        $region45: #{tpu_custom_call.1} parent=43 // pred_check
          %p1851 = pneg %p122
        $region46: #{tpu_custom_call.1} parent=43 // pred_check_branch
          %1853 = sbr.rel (%p1851) target = $region48
        $region47: #{tpu_custom_call.1} parent=43 // pred_region
          %s1854 = sand.u32 %s107, 1
          %s1855 = scalar_lea.sflag [#allocation4], %s1854
          %s1856 = sand.u32 %s107, 1
          %s1857 = smul.addr %s1856, 1008
          %s1858 = scalar_lea.vmem [#allocation5], %s1857
          %1860 = dma.done %s1855, 16128
        $region48: #{tpu_custom_call.1} parent=43 // pred_fallthru
          _
      $region44: #{tpu_custom_call.1} parent=5 // pred_fallthru
        _
    $region6: #{tpu_custom_call.1} parent=1 // loop_footer
      %s19 = sadd.s32 1, %s15
    $region7: #{tpu_custom_call.1} parent=1 // loop_footer_branch
      %14 = sbr.rel target = $region3
    $region8: #{tpu_custom_call.1} parent=1 // loop_exit
      _
    %1861 = vsyncpa [#allocation3], 1
    %s1862 = scalar_lea.sflag [#allocation3], 1
    %1863 = vsyncpa %s1862, 1
    %1864 = vsyncpa [#allocation4], 1
    %s1865 = scalar_lea.sflag [#allocation4], 1
    %1866 = vsyncpa %s1865, 1

</llo_original>
